<compile_context>
chip_gen: v6e
topology: v6e:2x2x1
jax: 0.10.0
libtpu: 0.0.40
codegen_flags: <defaults>
</compile_context>

<pallas_src>
import functools
import numpy as np

import jax
import jax.numpy as jnp
from jax.experimental import pallas as pl
from jax.experimental.pallas import tpu as pltpu


NUM_FUTURE_UTTS = 0
COMET_HIDDEN_SIZE = 32
_COS_EPS = 1e-8


# ----------------------------------------------------------------------------
# Fused forward kernel
# ----------------------------------------------------------------------------
def _viberc_fused_kernel(tok_ref, mask_ref, upm_ref, comet_ref, pe_ref,
                         enc_w_ref, enc_b_ref, rte_w_ref, rte_b_ref,
                         adapt_w_ref, adapt_b_ref,
                         hw1_ref, hb1_ref, hw2_ref, hb2_ref,
                         out_ref, *, B, S, K, Dc, C, out_w):
    f32, bf16 = jnp.float32, jnp.bfloat16

    def mm(a, w_bf):
        # bf16 operands feed the MXU natively on v5e/v6e/v7x; accumulate in f32.
        return jnp.dot(a.astype(bf16), w_bf, preferred_element_type=f32)

    # Load weights once, cast to bf16 once (MXU operands only).  Biases and all
    # element-wise math stay f32 (v5e has no bf16 VPU/EUP path).
    enc_w = enc_w_ref[...].astype(bf16); enc_b = enc_b_ref[...]
    rte_w = rte_w_ref[...].astype(bf16); rte_b = rte_b_ref[...]
    w0 = adapt_w_ref[0].astype(bf16); b0 = adapt_b_ref[0]
    w1 = adapt_w_ref[1].astype(bf16); b1 = adapt_b_ref[1]
    w2 = adapt_w_ref[2].astype(bf16); b2 = adapt_b_ref[2]
    w3 = adapt_w_ref[3].astype(bf16); b3 = adapt_b_ref[3]
    hw1 = hw1_ref[...].astype(bf16); hb1 = hb1_ref[...]
    hw2 = hw2_ref[...].astype(bf16); hb2 = hb2_ref[...]

    # --- encoder substitute: tanh((tok * attn_mask) @ Wenc + benc) ----------
    # Batch folded into MXU rows: tok is [B*S, D] -> one matmul for all batches.
    # TODO(synk): RobertaModel.from_pretrained has no in-script equivalent
    # (pretrained checkpoint); deterministic embedding + dense+tanh stand in.
    x = jnp.tanh(mm(tok_ref[...] * mask_ref[...], enc_w) + enc_b)    # [B*S, D]

    # RelTemporalEncoding row for the current-utterance position (loop invariant).
    # TODO(synk): RelTemporalEncoding body not supplied; standard HGT RTE used.
    rte = mm(pe_ref[...], rte_w) + rte_b                             # [1, D]

    # --- masked mean pooling (cuu row only) + COMET f/b aggregates ----------
    ck_in = comet_ref[...]                                           # [B*K, D]
    utt_rows, kf_rows, kb_rows = [], [], []
    for b in range(B):                                               # static unroll, B tiny
        m_b = upm_ref[b]                                             # [1, S]
        den = jnp.sum(m_b, axis=-1, keepdims=True) + 1e-9            # [1, 1]
        x_b = x[b * S:(b + 1) * S, :]                                # [S, D]
        utt_rows.append(mm(m_b, x_b) / den + rte)                    # pooled + RTE, [1, D]
        kf_rows.append(jnp.mean(ck_in[b * K:b * K + 5, :], axis=0, keepdims=True))  # forward_pos 0..4
        kb_rows.append(jnp.mean(ck_in[b * K + 5:b * K + 7, :], axis=0, keepdims=True))  # backward_pos 5..6
    utt = jnp.concatenate(utt_rows, axis=0)                          # [B, D]
    kf_in = jnp.concatenate(kf_rows, axis=0)                         # [B, D]
    kb_in = jnp.concatenate(kb_rows, axis=0)                         # [B, D]

    # --- GNN adapt_ws: one matmul per node type, whole batch ----------------
    # TODO(synk): GeneralConv/HGT `gcs` stack and edge construction not
    # provided -> treated as identity; comet_mask (edge gating only) is
    # therefore unused, and adapted nodes that never reach the outputs are
    # elided.  Dropout = eval-mode identity.
    tgt = jnp.tanh(mm(utt, w0) + b0)                                 # type-0 [B, D]
    kf = jnp.tanh(mm(kf_in, w1) + b1)[:, :Dc]                        # type-1 [B, Dc]
    kb = jnp.tanh(mm(kb_in, w2) + b2)[:, :Dc]                        # type-2 [B, Dc]
    ck = jnp.tanh(mm(ck_in, w3) + b3)[:, :Dc]                        # type-3 [B*K, Dc]

    # --- cosine similarity (forward & backward in one dot per batch) --------
    # normalize-then-dot == dot / (max(|a|,eps)*max(|k|,eps)); rsqrt -> EUP.
    eps2 = jnp.float32(_COS_EPS * _COS_EPS)

    def l2n(v):
        return v * jax.lax.rsqrt(
            jnp.maximum(jnp.sum(v * v, axis=-1, keepdims=True), eps2))

    kf_n, kb_n, ck_n = l2n(kf), l2n(kb), l2n(ck)
    f_rows, b_rows = [], []
    for b in range(B):
        know_b = jnp.concatenate([kf_n[b:b + 1, :], kb_n[b:b + 1, :]], axis=0)  # [2, Dc]
        # kept in f32: 2x9x32 dot is negligible and cosine accuracy matters.
        cos_b = jnp.einsum("nd,kd->nk", know_b, ck_n[b * K:(b + 1) * K, :],
                           preferred_element_type=f32)               # [2, K]
        f_rows.append(cos_b[0:1, :])
        b_rows.append(cos_b[1:2, :])
    f_cos = jnp.concatenate(f_rows, axis=0)                          # [B, K]
    b_cos = jnp.concatenate(b_rows, axis=0)                          # [B, K]

    # --- cu_utt_emo_prediction head (dropout = eval identity) ---------------
    hmid = jnp.tanh(mm(tgt, hw1) + hb1)                              # [B, D]
    logit = mm(hmid, hw2) + hb2                                      # [B, C]

    # --- pack the lane-dense output slab: [logits | f_cos | b_cos | pad] ----
    pieces = [logit, f_cos, b_cos]
    pad_w = out_w - (C + 2 * K)
    if pad_w:
        pieces.append(jnp.zeros((B, pad_w), f32))
    out_ref[...] = jnp.concatenate(pieces, axis=-1)   # single wide (lane-dense) store


# ----------------------------------------------------------------------------
# Parameters (deterministic, in-script)
# ----------------------------------------------------------------------------
def init_params(key, *, vocab, D, num_types, num_class, max_pos=64):
    keys = jax.random.split(key, 12)

    def lin(k, i, o):
        k1, k2 = jax.random.split(k)
        return (jax.random.normal(k1, (i, o), jnp.float32) * 0.02,
                jax.random.normal(k2, (1, o), jnp.float32) * 0.02)   # bias kept [1,N]

    p = {}
    p["tok_emb"] = jax.random.normal(keys[0], (vocab, D), jnp.float32) * 0.02
    p["enc_w"], p["enc_b"] = lin(keys[1], D, D)      # synthetic encoder projection
    p["rte_w"], p["rte_b"] = lin(keys[2], D, D)      # RelTemporalEncoding linear
    aw, ab = [], []
    for t in range(num_types):                       # GNN adapt_ws (4 x Linear(D, D))
        w, bb = lin(keys[3 + t], D, D)
        aw.append(w)
        ab.append(bb)
    p["adapt_w"] = jnp.stack(aw)                     # [T, D, D]
    p["adapt_b"] = jnp.stack(ab)                     # [T, 1, D]
    p["head_w1"], p["head_b1"] = lin(keys[8], D, D)          # cu_utt_emo Linear(D, D)
    p["head_w2"], p["head_b2"] = lin(keys[9], D, num_class)  # cu_utt_emo Linear(D, C)

    # sinusoidal table for RelTemporalEncoding
    pos = np.arange(max_pos, dtype=np.float32)[:, None]
    div = np.exp(np.arange(0, D, 2, dtype=np.float32) * -(np.log(10000.0) / D))
    pe = np.zeros((max_pos, D), np.float32)
    pe[:, 0::2] = np.sin(pos * div)
    pe[:, 1::2] = np.cos(pos * div)
    p["rte_pe"] = jnp.asarray(pe)
    return p


# ----------------------------------------------------------------------------
# VIBERC forward (conv_name='hgt' path, COMET_HIDDEN_SIZE == hidden_size,
# num_future_utterances == 0, eval-mode dropout == identity)
# ----------------------------------------------------------------------------
def viberc_forward(params, inputs, mask, utt_pos_mask, comet_inputs, comet_mask):
    # comet_mask only gates edge construction for the gcs stack in the
    # reference; with gcs as identity it has no effect on the returned tensors.
    del comet_mask

    B, S = inputs.shape
    WIN = utt_pos_mask.shape[0]
    K = comet_inputs.shape[2]
    D = params["tok_emb"].shape[1]
    Dc = COMET_HIDDEN_SIZE
    C = params["head_w2"].shape[1]
    cuu_pos = WIN - 1 if NUM_FUTURE_UTTS == 0 else (WIN - 1) // 2

    # Only the cuu_pos window position reaches the outputs (gcs == identity),
    # so slice it out here: the kernel never sees the dead WIN-1 positions.
    tok = params["tok_emb"][inputs].astype(jnp.float32).reshape(B * S, D)    # [B*S, D]
    mask_e = mask.astype(jnp.float32).reshape(B * S, 1)                      # [B*S, 1]
    upm = utt_pos_mask[cuu_pos].astype(jnp.float32)[:, None, :]              # [B, 1, S]
    comet_cuu = comet_inputs[:, cuu_pos].astype(jnp.float32).reshape(B * K, D)  # [B*K, D]
    pe = params["rte_pe"][cuu_pos:cuu_pos + 1]                               # [1, D]

    # Lane-dense packed output slab: [logits | f_cos | b_cos | zero pad]
    out_w = max(128, pl.cdiv(C + 2 * K, 128) * 128)

    out = pl.pallas_call(
        functools.partial(_viberc_fused_kernel, B=B, S=S, K=K, Dc=Dc, C=C,
                          out_w=out_w),
        out_shape=jax.ShapeDtypeStruct((B, out_w), jnp.float32),
        compiler_params=pltpu.CompilerParams(
            vmem_limit_bytes=32 * 1024 * 1024),   # explicit; fits every TPU gen
    )(tok, mask_e, upm, comet_cuu, pe,
      params["enc_w"], params["enc_b"], params["rte_w"], params["rte_b"],
      params["adapt_w"], params["adapt_b"],
      params["head_w1"], params["head_b1"], params["head_w2"], params["head_b2"])

    logits = out[:, :C]
    f_cos = out[:, C:C + K]
    b_cos = out[:, C + K:C + 2 * K]
    latent_params = {}   # variational 'utt' branch is commented out in the reference
    return logits, latent_params, f_cos, b_cos


# ----------------------------------------------------------------------------
if __name__ == "__main__":
    B, S, WIN, K, D, NUM_CLASS, VOCAB = 2, 16, 4, 9, 32, 4, 100
    assert COMET_HIDDEN_SIZE == D  # required by the 'hgt' graph concatenation

    key = jax.random.PRNGKey(0)
    pkey, k1, k2, k3 = jax.random.split(key, 4)
    params = init_params(pkey, vocab=VOCAB, D=D, num_types=4, num_class=NUM_CLASS)

    inputs = jax.random.randint(k1, (B, S), 0, VOCAB, dtype=jnp.int32)
    mask = jnp.ones((B, S), jnp.float32)
    utt_pos_mask = (jax.random.uniform(k2, (WIN, B, S)) > 0.3).astype(jnp.float32)
    comet_inputs = jax.random.normal(k3, (B, WIN, K, D), jnp.float32)
    comet_mask = jnp.ones((B, WIN), jnp.float32)

    logits, latent_params, f_cos, b_cos = viberc_forward(
        params, inputs, mask, utt_pos_mask, comet_inputs, comet_mask)
    jax.block_until_ready((logits, f_cos, b_cos))

    assert logits.shape == (B, NUM_CLASS)
    assert f_cos.shape == (B, K) and b_cos.shape == (B, K)
    assert isinstance(latent_params, dict) and len(latent_params) == 0
    print("KERNEL_OK")
</pallas_src>

<mosaic_0001>
module attributes {stable_mosaic.version = 11 : i64} {
  func.func @_viberc_fused_kernel(%arg0: memref<32x32xf32, #tpu.memory_space<vmem>>, %arg1: memref<32x1xf32, #tpu.memory_space<vmem>>, %arg2: memref<2x1x16xf32, #tpu.memory_space<vmem>>, %arg3: memref<18x32xf32, #tpu.memory_space<vmem>>, %arg4: memref<1x32xf32, #tpu.memory_space<vmem>>, %arg5: memref<32x32xf32, #tpu.memory_space<vmem>>, %arg6: memref<1x32xf32, #tpu.memory_space<vmem>>, %arg7: memref<32x32xf32, #tpu.memory_space<vmem>>, %arg8: memref<1x32xf32, #tpu.memory_space<vmem>>, %arg9: memref<4x32x32xf32, #tpu.memory_space<vmem>>, %arg10: memref<4x1x32xf32, #tpu.memory_space<vmem>>, %arg11: memref<32x32xf32, #tpu.memory_space<vmem>>, %arg12: memref<1x32xf32, #tpu.memory_space<vmem>>, %arg13: memref<32x4xf32, #tpu.memory_space<vmem>>, %arg14: memref<1x4xf32, #tpu.memory_space<vmem>>, %arg15: memref<2x128xf32, #tpu.memory_space<vmem>>) attributes {dimension_semantics = [], scalar_prefetch = 0 : i64, scratch_operands = 0 : i64, tpu.core_type = #tpu.core_type<tc>} {
    %c0 = arith.constant 0 : index
    %c0_0 = arith.constant 0 : index
    %0 = vector.load %arg5[%c0, %c0_0] : memref<32x32xf32, #tpu.memory_space<vmem>>, vector<32x32xf32>
    %1 = arith.truncf %0 : vector<32x32xf32> to vector<32x32xbf16>
    %c0_1 = arith.constant 0 : index
    %c0_2 = arith.constant 0 : index
    %2 = vector.load %arg6[%c0_1, %c0_2] : memref<1x32xf32, #tpu.memory_space<vmem>>, vector<1x32xf32>
    %c0_3 = arith.constant 0 : index
    %c0_4 = arith.constant 0 : index
    %3 = vector.load %arg7[%c0_3, %c0_4] : memref<32x32xf32, #tpu.memory_space<vmem>>, vector<32x32xf32>
    %4 = arith.truncf %3 : vector<32x32xf32> to vector<32x32xbf16>
    %c0_5 = arith.constant 0 : index
    %c0_6 = arith.constant 0 : index
    %5 = vector.load %arg8[%c0_5, %c0_6] : memref<1x32xf32, #tpu.memory_space<vmem>>, vector<1x32xf32>
    %c0_7 = arith.constant 0 : index
    %c0_8 = arith.constant 0 : index
    %c0_9 = arith.constant 0 : index
    %6 = vector.load %arg9[%c0_7, %c0_8, %c0_9] : memref<4x32x32xf32, #tpu.memory_space<vmem>>, vector<1x32x32xf32>
    %7 = vector.shape_cast %6 : vector<1x32x32xf32> to vector<32x32xf32>
    %8 = arith.truncf %7 : vector<32x32xf32> to vector<32x32xbf16>
    %c0_10 = arith.constant 0 : index
    %c0_11 = arith.constant 0 : index
    %c0_12 = arith.constant 0 : index
    %9 = vector.load %arg10[%c0_10, %c0_11, %c0_12] : memref<4x1x32xf32, #tpu.memory_space<vmem>>, vector<1x1x32xf32>
    %10 = vector.shape_cast %9 : vector<1x1x32xf32> to vector<1x32xf32>
    %c1 = arith.constant 1 : index
    %c0_13 = arith.constant 0 : index
    %c0_14 = arith.constant 0 : index
    %11 = vector.load %arg9[%c1, %c0_13, %c0_14] : memref<4x32x32xf32, #tpu.memory_space<vmem>>, vector<1x32x32xf32>
    %12 = vector.shape_cast %11 : vector<1x32x32xf32> to vector<32x32xf32>
    %13 = arith.truncf %12 : vector<32x32xf32> to vector<32x32xbf16>
    %c1_15 = arith.constant 1 : index
    %c0_16 = arith.constant 0 : index
    %c0_17 = arith.constant 0 : index
    %14 = vector.load %arg10[%c1_15, %c0_16, %c0_17] : memref<4x1x32xf32, #tpu.memory_space<vmem>>, vector<1x1x32xf32>
    %15 = vector.shape_cast %14 : vector<1x1x32xf32> to vector<1x32xf32>
    %c2 = arith.constant 2 : index
    %c0_18 = arith.constant 0 : index
    %c0_19 = arith.constant 0 : index
    %16 = vector.load %arg9[%c2, %c0_18, %c0_19] : memref<4x32x32xf32, #tpu.memory_space<vmem>>, vector<1x32x32xf32>
    %17 = vector.shape_cast %16 : vector<1x32x32xf32> to vector<32x32xf32>
    %18 = arith.truncf %17 : vector<32x32xf32> to vector<32x32xbf16>
    %c2_20 = arith.constant 2 : index
    %c0_21 = arith.constant 0 : index
    %c0_22 = arith.constant 0 : index
    %19 = vector.load %arg10[%c2_20, %c0_21, %c0_22] : memref<4x1x32xf32, #tpu.memory_space<vmem>>, vector<1x1x32xf32>
    %20 = vector.shape_cast %19 : vector<1x1x32xf32> to vector<1x32xf32>
    %c3 = arith.constant 3 : index
    %c0_23 = arith.constant 0 : index
    %c0_24 = arith.constant 0 : index
    %21 = vector.load %arg9[%c3, %c0_23, %c0_24] : memref<4x32x32xf32, #tpu.memory_space<vmem>>, vector<1x32x32xf32>
    %22 = vector.shape_cast %21 : vector<1x32x32xf32> to vector<32x32xf32>
    %23 = arith.truncf %22 : vector<32x32xf32> to vector<32x32xbf16>
    %c3_25 = arith.constant 3 : index
    %c0_26 = arith.constant 0 : index
    %c0_27 = arith.constant 0 : index
    %24 = vector.load %arg10[%c3_25, %c0_26, %c0_27] : memref<4x1x32xf32, #tpu.memory_space<vmem>>, vector<1x1x32xf32>
    %25 = vector.shape_cast %24 : vector<1x1x32xf32> to vector<1x32xf32>
    %c0_28 = arith.constant 0 : index
    %c0_29 = arith.constant 0 : index
    %26 = vector.load %arg11[%c0_28, %c0_29] : memref<32x32xf32, #tpu.memory_space<vmem>>, vector<32x32xf32>
    %27 = arith.truncf %26 : vector<32x32xf32> to vector<32x32xbf16>
    %c0_30 = arith.constant 0 : index
    %c0_31 = arith.constant 0 : index
    %28 = vector.load %arg12[%c0_30, %c0_31] : memref<1x32xf32, #tpu.memory_space<vmem>>, vector<1x32xf32>
    %c0_32 = arith.constant 0 : index
    %c0_33 = arith.constant 0 : index
    %29 = vector.load %arg13[%c0_32, %c0_33] : memref<32x4xf32, #tpu.memory_space<vmem>>, vector<32x4xf32>
    %30 = arith.truncf %29 : vector<32x4xf32> to vector<32x4xbf16>
    %c0_34 = arith.constant 0 : index
    %c0_35 = arith.constant 0 : index
    %31 = vector.load %arg14[%c0_34, %c0_35] : memref<1x4xf32, #tpu.memory_space<vmem>>, vector<1x4xf32>
    %c0_36 = arith.constant 0 : index
    %c0_37 = arith.constant 0 : index
    %32 = vector.load %arg0[%c0_36, %c0_37] : memref<32x32xf32, #tpu.memory_space<vmem>>, vector<32x32xf32>
    %c0_38 = arith.constant 0 : index
    %c0_39 = arith.constant 0 : index
    %33 = vector.load %arg1[%c0_38, %c0_39] : memref<32x1xf32, #tpu.memory_space<vmem>>, vector<32x1xf32>
    %34 = vector.broadcast %33 : vector<32x1xf32> to vector<32x32xf32>
    %35 = arith.mulf %32, %34 : vector<32x32xf32>
    %36 = arith.truncf %35 : vector<32x32xf32> to vector<32x32xbf16>
    %cst = arith.constant dense<0.000000e+00> : vector<32x32xf32>
    %37 = tpu.matmul %36, %1, %cst {dimension_numbers = #tpu.dot_dimension_numbers<[1], [0], [0], [1], [0, 0, 1, 1], [], []>} : vector<32x32xbf16>, vector<32x32xbf16>, vector<32x32xf32> -> vector<32x32xf32>
    %38 = vector.broadcast %2 : vector<1x32xf32> to vector<32x32xf32>
    %39 = arith.addf %37, %38 : vector<32x32xf32>
    %40 = math.tanh %39 : vector<32x32xf32>
    %c0_40 = arith.constant 0 : index
    %c0_41 = arith.constant 0 : index
    %41 = vector.load %arg4[%c0_40, %c0_41] : memref<1x32xf32, #tpu.memory_space<vmem>>, vector<1x32xf32>
    %42 = arith.truncf %41 : vector<1x32xf32> to vector<1x32xbf16>
    %cst_42 = arith.constant dense<0.000000e+00> : vector<1x32xf32>
    %43 = tpu.matmul %42, %4, %cst_42 {dimension_numbers = #tpu.dot_dimension_numbers<[1], [0], [0], [1], [0, 0, 1, 1], [], []>} : vector<1x32xbf16>, vector<32x32xbf16>, vector<1x32xf32> -> vector<1x32xf32>
    %44 = arith.addf %43, %5 : vector<1x32xf32>
    %c0_43 = arith.constant 0 : index
    %c0_44 = arith.constant 0 : index
    %45 = vector.load %arg3[%c0_43, %c0_44] : memref<18x32xf32, #tpu.memory_space<vmem>>, vector<18x32xf32>
    %c0_45 = arith.constant 0 : index
    %c0_46 = arith.constant 0 : index
    %c0_47 = arith.constant 0 : index
    %46 = vector.load %arg2[%c0_45, %c0_46, %c0_47] : memref<2x1x16xf32, #tpu.memory_space<vmem>>, vector<1x1x16xf32>
    %47 = vector.shape_cast %46 : vector<1x1x16xf32> to vector<1x16xf32>
    %cst_48 = arith.constant dense<0.000000e+00> : vector<1xf32>
    %48 = vector.multi_reduction <add>, %47, %cst_48 [1] : vector<1x16xf32> to vector<1xf32>
    %49 = vector.shape_cast %48 : vector<1xf32> to vector<1x1xf32>
    %cst_49 = arith.constant 9.99999971E-10 : f32
    %50 = vector.broadcast %cst_49 : f32 to vector<1x1xf32>
    %51 = arith.addf %49, %50 : vector<1x1xf32>
    %52 = vector.extract_strided_slice %40 {offsets = [0, 0], sizes = [16, 32], strides = [1, 1]} : vector<32x32xf32> to vector<16x32xf32>
    %53 = arith.truncf %47 : vector<1x16xf32> to vector<1x16xbf16>
    %cst_50 = arith.constant dense<0.000000e+00> : vector<1x32xf32>
    %54 = tpu.matmul %53, %52, %cst_50 {dimension_numbers = #tpu.dot_dimension_numbers<[1], [0], [0], [1], [0, 0, 1, 1], [], []>} : vector<1x16xbf16>, vector<16x32xf32>, vector<1x32xf32> -> vector<1x32xf32>
    %55 = vector.broadcast %51 : vector<1x1xf32> to vector<1x32xf32>
    %56 = arith.divf %54, %55 : vector<1x32xf32>
    %57 = arith.addf %56, %44 : vector<1x32xf32>
    %58 = vector.extract_strided_slice %45 {offsets = [0, 0], sizes = [5, 32], strides = [1, 1]} : vector<18x32xf32> to vector<5x32xf32>
    %cst_51 = arith.constant dense<0.000000e+00> : vector<32xf32>
    %59 = vector.multi_reduction <add>, %58, %cst_51 [0] : vector<5x32xf32> to vector<32xf32>
    %60 = vector.shape_cast %59 : vector<32xf32> to vector<1x32xf32>
    %cst_52 = arith.constant 5.000000e+00 : f32
    %61 = vector.broadcast %cst_52 : f32 to vector<1x32xf32>
    %62 = arith.divf %60, %61 : vector<1x32xf32>
    %63 = vector.extract_strided_slice %45 {offsets = [5, 0], sizes = [2, 32], strides = [1, 1]} : vector<18x32xf32> to vector<2x32xf32>
    %cst_53 = arith.constant dense<0.000000e+00> : vector<32xf32>
    %64 = vector.multi_reduction <add>, %63, %cst_53 [0] : vector<2x32xf32> to vector<32xf32>
    %65 = vector.shape_cast %64 : vector<32xf32> to vector<1x32xf32>
    %cst_54 = arith.constant 2.000000e+00 : f32
    %66 = vector.broadcast %cst_54 : f32 to vector<1x32xf32>
    %67 = arith.divf %65, %66 : vector<1x32xf32>
    %c1_55 = arith.constant 1 : index
    %c0_56 = arith.constant 0 : index
    %c0_57 = arith.constant 0 : index
    %68 = vector.load %arg2[%c1_55, %c0_56, %c0_57] : memref<2x1x16xf32, #tpu.memory_space<vmem>>, vector<1x1x16xf32>
    %69 = vector.shape_cast %68 : vector<1x1x16xf32> to vector<1x16xf32>
    %cst_58 = arith.constant dense<0.000000e+00> : vector<1xf32>
    %70 = vector.multi_reduction <add>, %69, %cst_58 [1] : vector<1x16xf32> to vector<1xf32>
    %71 = vector.shape_cast %70 : vector<1xf32> to vector<1x1xf32>
    %cst_59 = arith.constant 9.99999971E-10 : f32
    %72 = vector.broadcast %cst_59 : f32 to vector<1x1xf32>
    %73 = arith.addf %71, %72 : vector<1x1xf32>
    %74 = vector.extract_strided_slice %40 {offsets = [16, 0], sizes = [16, 32], strides = [1, 1]} : vector<32x32xf32> to vector<16x32xf32>
    %75 = arith.truncf %69 : vector<1x16xf32> to vector<1x16xbf16>
    %cst_60 = arith.constant dense<0.000000e+00> : vector<1x32xf32>
    %76 = tpu.matmul %75, %74, %cst_60 {dimension_numbers = #tpu.dot_dimension_numbers<[1], [0], [0], [1], [0, 0, 1, 1], [], []>} : vector<1x16xbf16>, vector<16x32xf32>, vector<1x32xf32> -> vector<1x32xf32>
    %77 = vector.broadcast %73 : vector<1x1xf32> to vector<1x32xf32>
    %78 = arith.divf %76, %77 : vector<1x32xf32>
    %79 = arith.addf %78, %44 : vector<1x32xf32>
    %80 = vector.extract_strided_slice %45 {offsets = [9, 0], sizes = [5, 32], strides = [1, 1]} : vector<18x32xf32> to vector<5x32xf32>
    %cst_61 = arith.constant dense<0.000000e+00> : vector<32xf32>
    %81 = vector.multi_reduction <add>, %80, %cst_61 [0] : vector<5x32xf32> to vector<32xf32>
    %82 = vector.shape_cast %81 : vector<32xf32> to vector<1x32xf32>
    %cst_62 = arith.constant 5.000000e+00 : f32
    %83 = vector.broadcast %cst_62 : f32 to vector<1x32xf32>
    %84 = arith.divf %82, %83 : vector<1x32xf32>
    %85 = vector.extract_strided_slice %45 {offsets = [14, 0], sizes = [2, 32], strides = [1, 1]} : vector<18x32xf32> to vector<2x32xf32>
    %cst_63 = arith.constant dense<0.000000e+00> : vector<32xf32>
    %86 = vector.multi_reduction <add>, %85, %cst_63 [0] : vector<2x32xf32> to vector<32xf32>
    %87 = vector.shape_cast %86 : vector<32xf32> to vector<1x32xf32>
    %cst_64 = arith.constant 2.000000e+00 : f32
    %88 = vector.broadcast %cst_64 : f32 to vector<1x32xf32>
    %89 = arith.divf %87, %88 : vector<1x32xf32>
    %90 = tpu.concatenate %57, %79 in 0 : vector<1x32xf32>, vector<1x32xf32> -> vector<2x32xf32>
    %91 = tpu.concatenate %62, %84 in 0 : vector<1x32xf32>, vector<1x32xf32> -> vector<2x32xf32>
    %92 = tpu.concatenate %67, %89 in 0 : vector<1x32xf32>, vector<1x32xf32> -> vector<2x32xf32>
    %93 = arith.truncf %90 : vector<2x32xf32> to vector<2x32xbf16>
    %cst_65 = arith.constant dense<0.000000e+00> : vector<2x32xf32>
    %94 = tpu.matmul %93, %8, %cst_65 {dimension_numbers = #tpu.dot_dimension_numbers<[1], [0], [0], [1], [0, 0, 1, 1], [], []>} : vector<2x32xbf16>, vector<32x32xbf16>, vector<2x32xf32> -> vector<2x32xf32>
    %95 = vector.broadcast %10 : vector<1x32xf32> to vector<2x32xf32>
    %96 = arith.addf %94, %95 : vector<2x32xf32>
    %97 = math.tanh %96 : vector<2x32xf32>
    %98 = arith.truncf %91 : vector<2x32xf32> to vector<2x32xbf16>
    %cst_66 = arith.constant dense<0.000000e+00> : vector<2x32xf32>
    %99 = tpu.matmul %98, %13, %cst_66 {dimension_numbers = #tpu.dot_dimension_numbers<[1], [0], [0], [1], [0, 0, 1, 1], [], []>} : vector<2x32xbf16>, vector<32x32xbf16>, vector<2x32xf32> -> vector<2x32xf32>
    %100 = vector.broadcast %15 : vector<1x32xf32> to vector<2x32xf32>
    %101 = arith.addf %99, %100 : vector<2x32xf32>
    %102 = math.tanh %101 : vector<2x32xf32>
    %103 = arith.truncf %92 : vector<2x32xf32> to vector<2x32xbf16>
    %cst_67 = arith.constant dense<0.000000e+00> : vector<2x32xf32>
    %104 = tpu.matmul %103, %18, %cst_67 {dimension_numbers = #tpu.dot_dimension_numbers<[1], [0], [0], [1], [0, 0, 1, 1], [], []>} : vector<2x32xbf16>, vector<32x32xbf16>, vector<2x32xf32> -> vector<2x32xf32>
    %105 = vector.broadcast %20 : vector<1x32xf32> to vector<2x32xf32>
    %106 = arith.addf %104, %105 : vector<2x32xf32>
    %107 = math.tanh %106 : vector<2x32xf32>
    %108 = arith.truncf %45 : vector<18x32xf32> to vector<18x32xbf16>
    %cst_68 = arith.constant dense<0.000000e+00> : vector<18x32xf32>
    %109 = tpu.matmul %108, %23, %cst_68 {dimension_numbers = #tpu.dot_dimension_numbers<[1], [0], [0], [1], [0, 0, 1, 1], [], []>} : vector<18x32xbf16>, vector<32x32xbf16>, vector<18x32xf32> -> vector<18x32xf32>
    %110 = vector.broadcast %25 : vector<1x32xf32> to vector<18x32xf32>
    %111 = arith.addf %109, %110 : vector<18x32xf32>
    %112 = math.tanh %111 : vector<18x32xf32>
    %113 = arith.mulf %102, %102 : vector<2x32xf32>
    %cst_69 = arith.constant dense<0.000000e+00> : vector<2xf32>
    %114 = vector.multi_reduction <add>, %113, %cst_69 [1] : vector<2x32xf32> to vector<2xf32>
    %115 = vector.shape_cast %114 : vector<2xf32> to vector<2x1xf32>
    %cst_70 = arith.constant 1.000000e-16 : f32
    %116 = vector.broadcast %cst_70 : f32 to vector<2x1xf32>
    %117 = arith.maximumf %115, %116 : vector<2x1xf32>
    %118 = math.rsqrt %117 : vector<2x1xf32>
    %119 = vector.broadcast %118 : vector<2x1xf32> to vector<2x32xf32>
    %120 = arith.mulf %102, %119 : vector<2x32xf32>
    %121 = arith.mulf %107, %107 : vector<2x32xf32>
    %cst_71 = arith.constant dense<0.000000e+00> : vector<2xf32>
    %122 = vector.multi_reduction <add>, %121, %cst_71 [1] : vector<2x32xf32> to vector<2xf32>
    %123 = vector.shape_cast %122 : vector<2xf32> to vector<2x1xf32>
    %cst_72 = arith.constant 1.000000e-16 : f32
    %124 = vector.broadcast %cst_72 : f32 to vector<2x1xf32>
    %125 = arith.maximumf %123, %124 : vector<2x1xf32>
    %126 = math.rsqrt %125 : vector<2x1xf32>
    %127 = vector.broadcast %126 : vector<2x1xf32> to vector<2x32xf32>
    %128 = arith.mulf %107, %127 : vector<2x32xf32>
    %129 = arith.mulf %112, %112 : vector<18x32xf32>
    %cst_73 = arith.constant dense<0.000000e+00> : vector<18xf32>
    %130 = vector.multi_reduction <add>, %129, %cst_73 [1] : vector<18x32xf32> to vector<18xf32>
    %131 = vector.shape_cast %130 : vector<18xf32> to vector<18x1xf32>
    %cst_74 = arith.constant 1.000000e-16 : f32
    %132 = vector.broadcast %cst_74 : f32 to vector<18x1xf32>
    %133 = arith.maximumf %131, %132 : vector<18x1xf32>
    %134 = math.rsqrt %133 : vector<18x1xf32>
    %135 = vector.broadcast %134 : vector<18x1xf32> to vector<18x32xf32>
    %136 = arith.mulf %112, %135 : vector<18x32xf32>
    %137 = vector.extract_strided_slice %120 {offsets = [0, 0], sizes = [1, 32], strides = [1, 1]} : vector<2x32xf32> to vector<1x32xf32>
    %138 = vector.extract_strided_slice %128 {offsets = [0, 0], sizes = [1, 32], strides = [1, 1]} : vector<2x32xf32> to vector<1x32xf32>
    %139 = tpu.concatenate %137, %138 in 0 : vector<1x32xf32>, vector<1x32xf32> -> vector<2x32xf32>
    %140 = vector.extract_strided_slice %136 {offsets = [0, 0], sizes = [9, 32], strides = [1, 1]} : vector<18x32xf32> to vector<9x32xf32>
    "tpu.trace_start"() <{level = 10 : i32, message = "nd,kd->nk"}> : () -> ()
    %cst_75 = arith.constant dense<0.000000e+00> : vector<2x9xf32>
    %141 = tpu.matmul %139, %140, %cst_75 {dimension_numbers = #tpu.dot_dimension_numbers<[1], [1], [0], [0], [0, 0, 1, 0], [], []>} : vector<2x32xf32>, vector<9x32xf32>, vector<2x9xf32> -> vector<2x9xf32>
    "tpu.trace_stop"() : () -> ()
    %142 = vector.extract_strided_slice %141 {offsets = [0, 0], sizes = [1, 9], strides = [1, 1]} : vector<2x9xf32> to vector<1x9xf32>
    %143 = vector.extract_strided_slice %141 {offsets = [1, 0], sizes = [1, 9], strides = [1, 1]} : vector<2x9xf32> to vector<1x9xf32>
    %144 = vector.extract_strided_slice %120 {offsets = [1, 0], sizes = [1, 32], strides = [1, 1]} : vector<2x32xf32> to vector<1x32xf32>
    %145 = vector.extract_strided_slice %128 {offsets = [1, 0], sizes = [1, 32], strides = [1, 1]} : vector<2x32xf32> to vector<1x32xf32>
    %146 = tpu.concatenate %144, %145 in 0 : vector<1x32xf32>, vector<1x32xf32> -> vector<2x32xf32>
    %147 = vector.extract_strided_slice %136 {offsets = [9, 0], sizes = [9, 32], strides = [1, 1]} : vector<18x32xf32> to vector<9x32xf32>
    "tpu.trace_start"() <{level = 10 : i32, message = "nd,kd->nk"}> : () -> ()
    %cst_76 = arith.constant dense<0.000000e+00> : vector<2x9xf32>
    %148 = tpu.matmul %146, %147, %cst_76 {dimension_numbers = #tpu.dot_dimension_numbers<[1], [1], [0], [0], [0, 0, 1, 0], [], []>} : vector<2x32xf32>, vector<9x32xf32>, vector<2x9xf32> -> vector<2x9xf32>
    "tpu.trace_stop"() : () -> ()
    %149 = vector.extract_strided_slice %148 {offsets = [0, 0], sizes = [1, 9], strides = [1, 1]} : vector<2x9xf32> to vector<1x9xf32>
    %150 = vector.extract_strided_slice %148 {offsets = [1, 0], sizes = [1, 9], strides = [1, 1]} : vector<2x9xf32> to vector<1x9xf32>
    %151 = tpu.concatenate %142, %149 in 0 : vector<1x9xf32>, vector<1x9xf32> -> vector<2x9xf32>
    %152 = tpu.concatenate %143, %150 in 0 : vector<1x9xf32>, vector<1x9xf32> -> vector<2x9xf32>
    %153 = arith.truncf %97 : vector<2x32xf32> to vector<2x32xbf16>
    %cst_77 = arith.constant dense<0.000000e+00> : vector<2x32xf32>
    %154 = tpu.matmul %153, %27, %cst_77 {dimension_numbers = #tpu.dot_dimension_numbers<[1], [0], [0], [1], [0, 0, 1, 1], [], []>} : vector<2x32xbf16>, vector<32x32xbf16>, vector<2x32xf32> -> vector<2x32xf32>
    %155 = vector.broadcast %28 : vector<1x32xf32> to vector<2x32xf32>
    %156 = arith.addf %154, %155 : vector<2x32xf32>
    %157 = math.tanh %156 : vector<2x32xf32>
    %158 = arith.truncf %157 : vector<2x32xf32> to vector<2x32xbf16>
    %cst_78 = arith.constant dense<0.000000e+00> : vector<2x4xf32>
    %159 = tpu.matmul %158, %30, %cst_78 {dimension_numbers = #tpu.dot_dimension_numbers<[1], [0], [0], [1], [0, 0, 1, 1], [], []>} : vector<2x32xbf16>, vector<32x4xbf16>, vector<2x4xf32> -> vector<2x4xf32>
    %160 = vector.broadcast %31 : vector<1x4xf32> to vector<2x4xf32>
    %161 = arith.addf %159, %160 : vector<2x4xf32>
    %cst_79 = arith.constant 0.000000e+00 : f32
    %162 = vector.broadcast %cst_79 : f32 to vector<2x106xf32>
    %163 = tpu.concatenate %161, %151, %152, %162 in 1 : vector<2x4xf32>, vector<2x9xf32>, vector<2x9xf32>, vector<2x106xf32> -> vector<2x128xf32>
    %c0_80 = arith.constant 0 : index
    %c0_81 = arith.constant 0 : index
    %164 = vector.load %arg15[%c0_80, %c0_81] : memref<2x128xf32, #tpu.memory_space<vmem>>, vector<2x128xf32>
    tpu.vector_store %arg15[%c0_80, %c0_81], %163 {strides = array<i32>} : memref<2x128xf32, #tpu.memory_space<vmem>>, vector<2x128xf32>,
    return
  }
}

</mosaic_0001>

<llo_original>
// kernel: tpu_custom_call.1
$region0: #{tpu_custom_call.1}
  #allocation0 [shape = 'u32[]', space=smem, size = 0x4, offset = 0x4, fixed_abs, tag = 'smem constant byte address 0x4 - core index']
  #allocation1 [shape = 'u32[144,128]{1,0:T(1,128)}', space=vmem, size = 0x12000, scoped, tag = 'internal scratch']
  %s0 = inlined_call_operand.vmem [shape: f32[32,32], index: 0, kind: input, shape index: {}]
  %s1 = inlined_call_operand.vmem [shape: f32[32,1], index: 1, kind: input, shape index: {}]
  %s2 = inlined_call_operand.hbm [shape: f32[2,1,16], index: 2, kind: input, shape index: {}]
  %s3 = inlined_call_operand.hbm [shape: f32[18,32], index: 3, kind: input, shape index: {}]
  %s4 = inlined_call_operand.vmem [shape: f32[1,32], index: 4, kind: input, shape index: {}]
  %s5 = inlined_call_operand.vmem [shape: f32[32,32], index: 5, kind: input, shape index: {}]
  %s6 = inlined_call_operand.vmem [shape: f32[1,32], index: 6, kind: input, shape index: {}]
  %s7 = inlined_call_operand.hbm [shape: f32[32,32], index: 7, kind: input, shape index: {}]
  %s8 = inlined_call_operand.vmem [shape: f32[1,32], index: 8, kind: input, shape index: {}]
  %s9 = inlined_call_operand.hbm [shape: f32[4,32,32], index: 9, kind: input, shape index: {}]
  %s10 = inlined_call_operand.vmem [shape: f32[4,1,32], index: 10, kind: input, shape index: {}]
  %s11 = inlined_call_operand.hbm [shape: f32[32,32], index: 11, kind: input, shape index: {}]
  %s12 = inlined_call_operand.vmem [shape: f32[1,32], index: 12, kind: input, shape index: {}]
  %s13 = inlined_call_operand.vmem [shape: f32[32,4], index: 13, kind: input, shape index: {}]
  %s14 = inlined_call_operand.vmem [shape: f32[1,4], index: 14, kind: input, shape index: {}]
  %s15 = inlined_call_operand.hbm [shape: f32[2,128], index: 15, kind: output, shape index: {}]
  %s16 = sld [smem:[#allocation0]]
  $region90: #{tpu_custom_call.1} parent=0
    _
  %s18 = ssub.s32 1, %s16
  %s19 = scalar_select 0, %s18, %s16
  $region1: #{tpu_custom_call.1} parent=0
    #allocation2 [shape = 'u8[1024]{0}', space=vmem, size = 0x400, scoped, tag = 'input window, operand 2, single buffered']
    #allocation3 [shape = 's32[1]{0}', space=sflag, size = 0x4, scoped, tag = 'scoped memory for tpu_custom_call.1']
    #allocation4 [shape = 's32[1]{0}', space=sflag, size = 0x4, scoped, tag = 'scoped memory for tpu_custom_call.1']
    #allocation5 [shape = 'u8[12288]{0}', space=vmem, size = 0x3000, scoped, tag = 'input window, operand 3, single buffered']
    #allocation6 [shape = 's32[1]{0}', space=sflag, size = 0x4, scoped, tag = 'scoped memory for tpu_custom_call.1']
    #allocation7 [shape = 'u8[16384]{0}', space=vmem, size = 0x4000, scoped, tag = 'input window, operand 7, single buffered']
    #allocation8 [shape = 'u8[65536]{0}', space=vmem, size = 0x10000, scoped, tag = 'input window, operand 9, single buffered']
    #allocation9 [shape = 's32[1]{0}', space=sflag, size = 0x4, scoped, tag = 'scoped memory for tpu_custom_call.1']
    #allocation10 [shape = 'u8[16384]{0}', space=vmem, size = 0x4000, scoped, tag = 'input window, operand 11, single buffered']
    #allocation11 [shape = 'u8[1024]{0}', space=vmem, size = 0x400, scoped, tag = 'output window, operand 0, single buffered']
    %20 = vsyncpa [#allocation3], 0
    %21 = vsyncpa [#allocation6], 0
    %22 = vsyncpa [#allocation9], 0
    %23 = vsyncpa [#allocation4], 0
    // Predicated region
    $region2: #{tpu_custom_call.1} parent=1 // pred_check
      _
    $region3: #{tpu_custom_call.1} parent=1 // pred_check_branch
      %25 = sbr.rel (0) target = $region5
    $region4: #{tpu_custom_call.1} parent=1 // pred_region
      _
    $region5: #{tpu_custom_call.1} parent=1 // pred_fallthru
      _
    // Predicated region
    $region6: #{tpu_custom_call.1} parent=1 // pred_check
      _
    $region7: #{tpu_custom_call.1} parent=1 // pred_check_branch
      %27 = sbr.rel (0) target = $region9
    $region8: #{tpu_custom_call.1} parent=1 // pred_region
      _
    $region9: #{tpu_custom_call.1} parent=1 // pred_fallthru
      _
    // Predicated region
    $region10: #{tpu_custom_call.1} parent=1 // pred_check
      _
    $region11: #{tpu_custom_call.1} parent=1 // pred_check_branch
      %29 = sbr.rel (0) target = $region13
    $region12: #{tpu_custom_call.1} parent=1 // pred_region
      %s31 = ssub.s32 32, 32
      %32 = vsyncadd [#allocation3], %s31
      %s33 = sshll.u32 [#allocation2], 4
      %s34 = int_to_ptr.vmem [resolvable:$true] %s33
      %39 = dma.hbm_to_vmem [thread:$0]  %s2, 32, %s34, [#allocation3], 16, 16, 1
    $region13: #{tpu_custom_call.1} parent=1 // pred_fallthru
      _
    // Predicated region
    $region14: #{tpu_custom_call.1} parent=1 // pred_check
      _
    $region15: #{tpu_custom_call.1} parent=1 // pred_check_branch
      %41 = sbr.rel (0) target = $region17
    $region16: #{tpu_custom_call.1} parent=1 // pred_region
      %s43 = ssub.s32 384, 384
      %44 = vsyncadd [#allocation6], %s43
      %s45 = sshll.u32 [#allocation5], 4
      %s46 = int_to_ptr.vmem [resolvable:$true] %s45
      %51 = dma.hbm_to_vmem [thread:$0]  %s3, 384, %s46, [#allocation6], 128, 128, 8
    $region17: #{tpu_custom_call.1} parent=1 // pred_fallthru
      _
    // Predicated region
    $region18: #{tpu_custom_call.1} parent=1 // pred_check
      _
    $region19: #{tpu_custom_call.1} parent=1 // pred_check_branch
      %53 = sbr.rel (0) target = $region21
    $region20: #{tpu_custom_call.1} parent=1 // pred_region
      _
    $region21: #{tpu_custom_call.1} parent=1 // pred_fallthru
      _
    // Predicated region
    $region22: #{tpu_custom_call.1} parent=1 // pred_check
      _
    $region23: #{tpu_custom_call.1} parent=1 // pred_check_branch
      %55 = sbr.rel (0) target = $region25
    $region24: #{tpu_custom_call.1} parent=1 // pred_region
      _
    $region25: #{tpu_custom_call.1} parent=1 // pred_fallthru
      _
    // Predicated region
    $region26: #{tpu_custom_call.1} parent=1 // pred_check
      _
    $region27: #{tpu_custom_call.1} parent=1 // pred_check_branch
      %57 = sbr.rel (0) target = $region29
    $region28: #{tpu_custom_call.1} parent=1 // pred_region
      _
    $region29: #{tpu_custom_call.1} parent=1 // pred_fallthru
      _
    // Predicated region
    $region30: #{tpu_custom_call.1} parent=1 // pred_check
      _
    $region31: #{tpu_custom_call.1} parent=1 // pred_check_branch
      %59 = sbr.rel (0) target = $region33
    $region32: #{tpu_custom_call.1} parent=1 // pred_region
      %s61 = ssub.s32 512, 512
      %62 = vsyncadd [#allocation6], %s61
      %s63 = sshll.u32 [#allocation7], 4
      %s64 = int_to_ptr.vmem [resolvable:$true] %s63
      %69 = dma.hbm_to_vmem [thread:$0]  %s7, 512, %s64, [#allocation6], 128, 128, 8
    $region33: #{tpu_custom_call.1} parent=1 // pred_fallthru
      _
    // Predicated region
    $region34: #{tpu_custom_call.1} parent=1 // pred_check
      _
    $region35: #{tpu_custom_call.1} parent=1 // pred_check_branch
      %71 = sbr.rel (0) target = $region37
    $region36: #{tpu_custom_call.1} parent=1 // pred_region
      _
    $region37: #{tpu_custom_call.1} parent=1 // pred_fallthru
      _
    // Predicated region
    $region38: #{tpu_custom_call.1} parent=1 // pred_check
      _
    $region39: #{tpu_custom_call.1} parent=1 // pred_check_branch
      %73 = sbr.rel (0) target = $region41
    $region40: #{tpu_custom_call.1} parent=1 // pred_region
      %s75 = ssub.s32 2048, 2048
      %76 = vsyncadd [#allocation9], %s75
      %s77 = sshll.u32 [#allocation8], 4
      %s78 = int_to_ptr.vmem [resolvable:$true] %s77
      %83 = dma.hbm_to_vmem [thread:$0]  %s9, 2048, %s78, [#allocation9], 128, 128, 8
    $region41: #{tpu_custom_call.1} parent=1 // pred_fallthru
      _
    // Predicated region
    $region42: #{tpu_custom_call.1} parent=1 // pred_check
      _
    $region43: #{tpu_custom_call.1} parent=1 // pred_check_branch
      %85 = sbr.rel (0) target = $region45
    $region44: #{tpu_custom_call.1} parent=1 // pred_region
      _
    $region45: #{tpu_custom_call.1} parent=1 // pred_fallthru
      _
    // Predicated region
    $region46: #{tpu_custom_call.1} parent=1 // pred_check
      _
    $region47: #{tpu_custom_call.1} parent=1 // pred_check_branch
      %87 = sbr.rel (0) target = $region49
    $region48: #{tpu_custom_call.1} parent=1 // pred_region
      %s89 = ssub.s32 512, 512
      %90 = vsyncadd [#allocation9], %s89
      %s91 = sshll.u32 [#allocation10], 4
      %s92 = int_to_ptr.vmem [resolvable:$true] %s91
      %97 = dma.hbm_to_vmem [thread:$0]  %s11, 512, %s92, [#allocation9], 128, 128, 8
    $region49: #{tpu_custom_call.1} parent=1 // pred_fallthru
      _
    // Predicated region
    $region50: #{tpu_custom_call.1} parent=1 // pred_check
      _
    $region51: #{tpu_custom_call.1} parent=1 // pred_check_branch
      %99 = sbr.rel (0) target = $region53
    $region52: #{tpu_custom_call.1} parent=1 // pred_region
      _
    $region53: #{tpu_custom_call.1} parent=1 // pred_fallthru
      _
    // Predicated region
    $region54: #{tpu_custom_call.1} parent=1 // pred_check
      _
    $region55: #{tpu_custom_call.1} parent=1 // pred_check_branch
      %101 = sbr.rel (0) target = $region57
    $region56: #{tpu_custom_call.1} parent=1 // pred_region
      _
    $region57: #{tpu_custom_call.1} parent=1 // pred_fallthru
      _
    // Predicated region
    $region58: #{tpu_custom_call.1} parent=1 // pred_check
      _
    $region59: #{tpu_custom_call.1} parent=1 // pred_check_branch
      %103 = sbr.rel (0) target = $region61
    $region60: #{tpu_custom_call.1} parent=1 // pred_region
      _
    $region61: #{tpu_custom_call.1} parent=1 // pred_fallthru
      _
    // Predicated region
    $region62: #{tpu_custom_call.1} parent=1 // pred_check
      _
    $region63: #{tpu_custom_call.1} parent=1 // pred_check_branch
      %105 = sbr.rel (0) target = $region65
    $region64: #{tpu_custom_call.1} parent=1 // pred_region
      %106 = dma.done [#allocation3], 32
    $region65: #{tpu_custom_call.1} parent=1 // pred_fallthru
      _
    // Predicated region
    $region66: #{tpu_custom_call.1} parent=1 // pred_check
      _
    $region67: #{tpu_custom_call.1} parent=1 // pred_check_branch
      %108 = sbr.rel (0) target = $region69
    $region68: #{tpu_custom_call.1} parent=1 // pred_region
      %109 = dma.done [#allocation6], 384
    $region69: #{tpu_custom_call.1} parent=1 // pred_fallthru
      _
    // Predicated region
    $region70: #{tpu_custom_call.1} parent=1 // pred_check
      _
    $region71: #{tpu_custom_call.1} parent=1 // pred_check_branch
      %111 = sbr.rel (0) target = $region73
    $region72: #{tpu_custom_call.1} parent=1 // pred_region
      %112 = dma.done [#allocation6], 512
    $region73: #{tpu_custom_call.1} parent=1 // pred_fallthru
      _
    // Predicated region
    $region74: #{tpu_custom_call.1} parent=1 // pred_check
      _
    $region75: #{tpu_custom_call.1} parent=1 // pred_check_branch
      %114 = sbr.rel (0) target = $region77
    $region76: #{tpu_custom_call.1} parent=1 // pred_region
      %115 = dma.done [#allocation9], 2048
    $region77: #{tpu_custom_call.1} parent=1 // pred_fallthru
      _
    // Predicated region
    $region78: #{tpu_custom_call.1} parent=1 // pred_check
      _
    $region79: #{tpu_custom_call.1} parent=1 // pred_check_branch
      %117 = sbr.rel (0) target = $region81
    $region80: #{tpu_custom_call.1} parent=1 // pred_region
      %118 = dma.done [#allocation9], 512
    $region81: #{tpu_custom_call.1} parent=1 // pred_fallthru
      _
    %v120 = vld [vmem:[%s5] sm:$0xff]
    %v121 = vld [vmem:[%s5 + $0x8] sm:$0xff]
    %v122 = vld [vmem:[%s5 + $0x10] sm:$0xff]
    %v123 = vld [vmem:[%s5 + $0x18] sm:$0xff]
    %v124 = vpack.c.bf16 %v121, %v120
    %v125 = vpack.c.bf16 %v123, %v122
    %v126 = vld [vmem:[%s6] sm:$0x1]
    %v127 = vld [vmem:[#allocation7] sm:$0xff]
    %v128 = vld [vmem:[#allocation7 + $0x8] sm:$0xff]
    %v129 = vld [vmem:[#allocation7 + $0x10] sm:$0xff]
    %v130 = vld [vmem:[#allocation7 + $0x18] sm:$0xff]
    %v131 = vpack.c.bf16 %v128, %v127
    %v132 = vpack.c.bf16 %v130, %v129
    %v133 = vld [vmem:[%s8] sm:$0x1]
    %v134 = vld [vmem:[#allocation8] sm:$0xff]
    %v135 = vld [vmem:[#allocation8 + $0x8] sm:$0xff]
    %v136 = vld [vmem:[#allocation8 + $0x10] sm:$0xff]
    %v137 = vld [vmem:[#allocation8 + $0x18] sm:$0xff]
    %v138 = vpack.c.bf16 %v135, %v134
    %v139 = vpack.c.bf16 %v137, %v136
    %v140 = vld [vmem:[%s10] sm:$0x1]
    %s141 = scalar_lea.vmem [#allocation8], 32
    %v142 = vld [vmem:[%s141] sm:$0xff]
    %v143 = vld [vmem:[%s141 + $0x8] sm:$0xff]
    %v144 = vld [vmem:[%s141 + $0x10] sm:$0xff]
    %v145 = vld [vmem:[%s141 + $0x18] sm:$0xff]
    %v146 = vpack.c.bf16 %v143, %v142
    %v147 = vpack.c.bf16 %v145, %v144
    %s148 = scalar_lea.vmem %s10, 1
    %v149 = vld [vmem:[%s148] sm:$0x1]
    %s150 = scalar_lea.vmem [#allocation8], 64
    %v151 = vld [vmem:[%s150] sm:$0xff]
    %v152 = vld [vmem:[%s150 + $0x8] sm:$0xff]
    %v153 = vld [vmem:[%s150 + $0x10] sm:$0xff]
    %v154 = vld [vmem:[%s150 + $0x18] sm:$0xff]
    %v155 = vpack.c.bf16 %v152, %v151
    %v156 = vpack.c.bf16 %v154, %v153
    %s157 = scalar_lea.vmem %s10, 2
    %v158 = vld [vmem:[%s157] sm:$0x1]
    %s159 = scalar_lea.vmem [#allocation8], 96
    %v160 = vld [vmem:[%s159] sm:$0xff]
    %v161 = vld [vmem:[%s159 + $0x8] sm:$0xff]
    %v162 = vld [vmem:[%s159 + $0x10] sm:$0xff]
    %v163 = vld [vmem:[%s159 + $0x18] sm:$0xff]
    %v164 = vpack.c.bf16 %v161, %v160
    %v165 = vpack.c.bf16 %v163, %v162
    %s166 = scalar_lea.vmem %s10, 3
    %v167 = vld [vmem:[%s166] sm:$0x1]
    %v168 = vld [vmem:[#allocation10] sm:$0xff]
    %v169 = vld [vmem:[#allocation10 + $0x8] sm:$0xff]
    %v170 = vld [vmem:[#allocation10 + $0x10] sm:$0xff]
    %v171 = vld [vmem:[#allocation10 + $0x18] sm:$0xff]
    %v172 = vpack.c.bf16 %v169, %v168
    %v173 = vpack.c.bf16 %v171, %v170
    %v174 = vld [vmem:[%s12] sm:$0x1]
    %v175 = vld [vmem:[%s13] sm:$0xff]
    %v176 = vld [vmem:[%s13 + $0x8] sm:$0xff]
    %v177 = vld [vmem:[%s13 + $0x10] sm:$0xff]
    %v178 = vld [vmem:[%s13 + $0x18] sm:$0xff]
    %v179 = vpack.c.bf16 %v176, %v175
    %v180 = vpack.c.bf16 %v178, %v177
    %v181 = vld [vmem:[%s14] sm:$0x1]
    %v182 = vld [vmem:[%s0] sm:$0xff]
    %v183 = vld [vmem:[%s0 + $0x8] sm:$0xff]
    %v184 = vld [vmem:[%s0 + $0x10] sm:$0xff]
    %v185 = vld [vmem:[%s0 + $0x18] sm:$0xff]
    %v186 = vld [vmem:[%s1] sm:$0xff]
    %v187 = vld [vmem:[%s1 + $0x8] sm:$0xff]
    %v188 = vld [vmem:[%s1 + $0x10] sm:$0xff]
    %v189 = vld [vmem:[%s1 + $0x18] sm:$0xff]
    %191 = vset.pattern.permute.xlu0 0
    %192 = vperm.xlu0 %191, %v186
    %v193 = vpop.permute.xlu0 %192
    %196 = vset.pattern.permute.xlu0 0
    %197 = vperm.xlu0 %196, %v187
    %v198 = vpop.permute.xlu0 %197
    %201 = vset.pattern.permute.xlu0 0
    %202 = vperm.xlu0 %201, %v188
    %v203 = vpop.permute.xlu0 %202
    %206 = vset.pattern.permute.xlu0 0
    %207 = vperm.xlu0 %206, %v189
    %v208 = vpop.permute.xlu0 %207
    %v210 = vmul.f32 %v182, %v193
    %v211 = vmul.f32 %v183, %v198
    %v212 = vmul.f32 %v184, %v203
    %v213 = vmul.f32 %v185, %v208
    %v214 = vpack.c.bf16 %v211, %v210
    %v215 = vpack.c.bf16 %v213, %v212
    %v217 = vlaneseq
    %v218 = vshrl.u32 %v217, 7
    %v219 = vsub.s32 0, %v218
    %v220 = vrot.slane %v126, %v219
    %vm222 = vcmask 261120
    %v224 = vsel %vm222, %v214, 0
    %v227 = vsel %vm222, %v215, 0
    %229 = vmatprep.subr.bf16.mxu0 0
    %230 = vmatpush1.bf16.msra.mxu0 0
    %231 = vmatprep.subr.bf16.mxu0 0
    %232 = vmatpush1.bf16.msra.mxu0 0
    %233 = vmatprep.subr.bf16.mxu0 0
    %234 = vmatpush1.bf16.msra.mxu0 0
    %235 = vmatprep.subr.bf16.mxu0 0
    %236 = vmatpush1.bf16.msra.mxu0 0
    %237 = vmatprep.subr.bf16.mxu0 0
    %238 = vmatpush1.bf16.msra.mxu0 0
    %239 = vmatprep.subr.bf16.mxu0 0
    %240 = vmatpush1.bf16.msra.mxu0 0
    %241 = vmatprep.subr.bf16.mxu0 0
    %242 = vmatpush1.bf16.msra.mxu0 %v125
    %243 = vmatprep.subr.bf16.mxu0 0
    %244 = vmatpush1.bf16.msra.mxu0 %v124
    %245 = vmatprep.subr.bf16.mxu0 0
    %246 = vmatpush2.bf16.msra.mxu0 0
    %247 = vmatprep.subr.bf16.mxu0 0
    %248 = vmatpush2.bf16.msra.mxu0 0
    %249 = vmatprep.subr.bf16.mxu0 0
    %250 = vmatpush2.bf16.msra.mxu0 0
    %251 = vmatprep.subr.bf16.mxu0 0
    %252 = vmatpush2.bf16.msra.mxu0 0
    %253 = vmatprep.subr.bf16.mxu0 0
    %254 = vmatpush2.bf16.msra.mxu0 0
    %255 = vmatprep.subr.bf16.mxu0 0
    %256 = vmatpush2.bf16.msra.mxu0 0
    %257 = vmatprep.subr.bf16.mxu0 0
    %258 = vmatpush2.bf16.msra.mxu0 0
    %259 = vmatprep.subr.bf16.mxu0 0
    %260 = vmatpush2.bf16.msra.mxu0 0
    %261 = vmatprep.mubr.bf16.mxu0 0
    %262 = vmatmul.mubr.bf16.gmra.mxu0 %v224
    %v263 = vpop.f32.mrf.mxu0
    %v264 = vadd.f32 %v220, %v263
    %v265 = vpop.f32.mrf.mxu0
    %v266 = vpop.f32.mrf.mxu0
    %v267 = vadd.f32 %v220, %v266
    %v268 = vpop.f32.mrf.mxu0
    %269 = vmatprep.mubr.bf16.mxu0 0
    %270 = vmatmul.mubr.bf16.gmra.mxu0 %v227
    %v271 = vpop.f32.mrf.mxu0
    %v272 = vadd.f32 %v220, %v271
    %v273 = vpop.f32.mrf.mxu0
    %v274 = vpop.f32.mrf.mxu0
    %v275 = vadd.f32 %v220, %v274
    %v276 = vpop.f32.mrf.mxu0
    %277 = vdwg.mxu0
    %v278 = vtanh.pop %v264
    %v279 = vtanh.pop %v267
    %v280 = vtanh.pop %v272
    %v281 = vtanh.pop %v275
    %v282 = vld [vmem:[%s4] sm:$0x1]
    %v283 = vpack.c.bf16 %v282, %v282
    %v285 = vsel %vm222, %v283, 0
    %287 = vmatprep.subr.bf16.mxu0 0
    %288 = vmatpush1.bf16.msra.mxu0 0
    %289 = vmatprep.subr.bf16.mxu0 0
    %290 = vmatpush1.bf16.msra.mxu0 0
    %291 = vmatprep.subr.bf16.mxu0 0
    %292 = vmatpush1.bf16.msra.mxu0 0
    %293 = vmatprep.subr.bf16.mxu0 0
    %294 = vmatpush1.bf16.msra.mxu0 0
    %295 = vmatprep.subr.bf16.mxu0 0
    %296 = vmatpush1.bf16.msra.mxu0 0
    %297 = vmatprep.subr.bf16.mxu0 0
    %298 = vmatpush1.bf16.msra.mxu0 0
    %299 = vmatprep.subr.bf16.mxu0 0
    %300 = vmatpush1.bf16.msra.mxu0 %v132
    %301 = vmatprep.subr.bf16.mxu0 0
    %302 = vmatpush1.bf16.msra.mxu0 %v131
    %303 = vmatprep.subr.bf16.mxu0 0
    %304 = vmatpush2.bf16.msra.mxu0 0
    %305 = vmatprep.subr.bf16.mxu0 0
    %306 = vmatpush2.bf16.msra.mxu0 0
    %307 = vmatprep.subr.bf16.mxu0 0
    %308 = vmatpush2.bf16.msra.mxu0 0
    %309 = vmatprep.subr.bf16.mxu0 0
    %310 = vmatpush2.bf16.msra.mxu0 0
    %311 = vmatprep.subr.bf16.mxu0 0
    %312 = vmatpush2.bf16.msra.mxu0 0
    %313 = vmatprep.subr.bf16.mxu0 0
    %314 = vmatpush2.bf16.msra.mxu0 0
    %315 = vmatprep.subr.bf16.mxu0 0
    %316 = vmatpush2.bf16.msra.mxu0 0
    %317 = vmatprep.subr.bf16.mxu0 0
    %318 = vmatpush2.bf16.msra.mxu0 0
    %319 = vmatprep.mubr.bf16.mxu0 0
    %320 = vmatmul.mubr.bf16.gmra.mxu0 %v285
    %v321 = vpop.f32.mrf.mxu0
    %v322 = vadd.f32 %v133, %v321
    %v323 = vpop.f32.mrf.mxu0
    %v324 = vpop.f32.mrf.mxu0
    %v325 = vpop.f32.mrf.mxu0
    %326 = vdwg.mxu0
    %v327 = vld [vmem:[#allocation5] sm:$0xff]
    %v328 = vld [vmem:[#allocation5 + $0x8] sm:$0xff]
    %v329 = vld [vmem:[#allocation5 + $0x10] sm:$0x3]
    %v330 = vld [vmem:[#allocation2] sm:$0x1]
    %vm331 = vcmask 122880
    %v332 = vsel %vm331, %v330, 0.0
    %333 = vadd.xlane.f32.xlu0 %v332
    %v334 = vpop.xlane.xlu0 %333
    %v335 = vadd.f32 %v334, 1e-09
    %v336 = vpack.c.bf16 %v330, %v330
    %vm337 = vcmask 130048
    %v339 = vsel %vm337, %v336, 0
    %341 = vmatprep.subr.mxu0 0.0
    %342 = vmatpush1.msra.mxu0 0.0
    %343 = vmatprep.subr.mxu0 0.0
    %344 = vmatpush1.msra.mxu0 0.0
    %345 = vmatprep.subr.mxu0 0.0
    %346 = vmatpush1.msra.mxu0 0.0
    %347 = vmatprep.subr.mxu0 0.0
    %348 = vmatpush1.msra.mxu0 0.0
    %349 = vmatprep.subr.mxu0 0.0
    %350 = vmatpush1.msra.mxu0 0.0
    %351 = vmatprep.subr.mxu0 0.0
    %352 = vmatpush1.msra.mxu0 0.0
    %353 = vmatprep.subr.mxu0 0.0
    %354 = vmatpush1.msra.mxu0 0.0
    %355 = vmatprep.subr.mxu0 0.0
    %356 = vmatpush1.msra.mxu0 0.0
    %357 = vmatprep.subr.mxu0 0.0
    %358 = vmatpush1.msra.mxu0 0.0
    %359 = vmatprep.subr.mxu0 0.0
    %360 = vmatpush1.msra.mxu0 0.0
    %361 = vmatprep.subr.mxu0 0.0
    %362 = vmatpush1.msra.mxu0 0.0
    %363 = vmatprep.subr.mxu0 0.0
    %364 = vmatpush1.msra.mxu0 0.0
    %365 = vmatprep.subr.mxu0 0.0
    %366 = vmatpush1.msra.mxu0 0.0
    %367 = vmatprep.subr.mxu0 0.0
    %368 = vmatpush1.msra.mxu0 0.0
    %369 = vmatprep.subr.mxu0 0.0
    %370 = vmatpush1.msra.mxu0 %v279
    %371 = vmatprep.subr.mxu0 0.0
    %372 = vmatpush1.msra.mxu0 %v278
    %373 = vmatprep.subr.mxu0 0.0
    %374 = vmatpush2.msra.mxu0 0.0
    %375 = vmatprep.subr.mxu0 0.0
    %376 = vmatpush2.msra.mxu0 0.0
    %377 = vmatprep.subr.mxu0 0.0
    %378 = vmatpush2.msra.mxu0 0.0
    %379 = vmatprep.subr.mxu0 0.0
    %380 = vmatpush2.msra.mxu0 0.0
    %381 = vmatprep.subr.mxu0 0.0
    %382 = vmatpush2.msra.mxu0 0.0
    %383 = vmatprep.subr.mxu0 0.0
    %384 = vmatpush2.msra.mxu0 0.0
    %385 = vmatprep.subr.mxu0 0.0
    %386 = vmatpush2.msra.mxu0 0.0
    %387 = vmatprep.subr.mxu0 0.0
    %388 = vmatpush2.msra.mxu0 0.0
    %389 = vmatprep.subr.mxu0 0.0
    %390 = vmatpush2.msra.mxu0 0.0
    %391 = vmatprep.subr.mxu0 0.0
    %392 = vmatpush2.msra.mxu0 0.0
    %393 = vmatprep.subr.mxu0 0.0
    %394 = vmatpush2.msra.mxu0 0.0
    %395 = vmatprep.subr.mxu0 0.0
    %396 = vmatpush2.msra.mxu0 0.0
    %397 = vmatprep.subr.mxu0 0.0
    %398 = vmatpush2.msra.mxu0 0.0
    %399 = vmatprep.subr.mxu0 0.0
    %400 = vmatpush2.msra.mxu0 0.0
    %401 = vmatprep.subr.mxu0 0.0
    %402 = vmatpush2.msra.mxu0 0.0
    %403 = vmatprep.subr.mxu0 0.0
    %404 = vmatpush2.msra.mxu0 0.0
    %405 = vmatprep.mubr.bf16.mxu0 0
    %406 = vmatmul.mubr.bf16.gmra.mxu0 %v339
    %v407 = vpop.f32.mrf.mxu0
    %v408 = vadd.f32 0.0, %v407
    %v409 = vpop.f32.mrf.mxu0
    %v410 = vpop.f32.mrf.mxu0
    %v411 = vpop.f32.mrf.mxu0
    %412 = vdwg.mxu0
    %v413 = vrcp.pop %v335
    %v414 = vmul.f32 %v408, %v413
    %v415 = vadd.f32 %v414, %v322
    %vm416 = vcmask 258048
    %v417 = vsel %vm416, %v327, 0.0
    %v418 = vrot.slane %v417, 4
    %v419 = vadd.f32 %v417, %v418
    %v420 = vrot.slane %v419, 2
    %v421 = vadd.f32 %v419, %v420
    %v422 = vrot.slane %v421, 1
    %v423 = vadd.f32 %v421, %v422
    %v424 = vrcp.pop 5.0
    %v425 = vmul.f32 %v423, %v424
    %v427 = vrot.slane %v327, 5
    %vm429 = vcmask 254976
    %v430 = vsel %vm429, %v427, 0.0
    %v431 = vrot.slane %v430, 4
    %v432 = vadd.f32 %v430, %v431
    %v433 = vrot.slane %v432, 2
    %v434 = vadd.f32 %v432, %v433
    %v435 = vrot.slane %v434, 1
    %v436 = vadd.f32 %v434, %v435
    %v437 = vrcp.pop 2.0
    %v438 = vmul.f32 %v436, %v437
    %s439 = scalar_lea.vmem [#allocation2], 1
    %v440 = vld [vmem:[%s439] sm:$0x1]
    %v441 = vsel %vm331, %v440, 0.0
    %442 = vadd.xlane.f32.xlu0 %v441
    %v443 = vpop.xlane.xlu0 %442
    %v444 = vadd.f32 %v443, 1e-09
    %v445 = vpack.c.bf16 %v440, %v440
    %v447 = vsel %vm337, %v445, 0
    %449 = vmatprep.subr.mxu0 0.0
    %450 = vmatpush1.msra.mxu0 0.0
    %451 = vmatprep.subr.mxu0 0.0
    %452 = vmatpush1.msra.mxu0 0.0
    %453 = vmatprep.subr.mxu0 0.0
    %454 = vmatpush1.msra.mxu0 0.0
    %455 = vmatprep.subr.mxu0 0.0
    %456 = vmatpush1.msra.mxu0 0.0
    %457 = vmatprep.subr.mxu0 0.0
    %458 = vmatpush1.msra.mxu0 0.0
    %459 = vmatprep.subr.mxu0 0.0
    %460 = vmatpush1.msra.mxu0 0.0
    %461 = vmatprep.subr.mxu0 0.0
    %462 = vmatpush1.msra.mxu0 0.0
    %463 = vmatprep.subr.mxu0 0.0
    %464 = vmatpush1.msra.mxu0 0.0
    %465 = vmatprep.subr.mxu0 0.0
    %466 = vmatpush1.msra.mxu0 0.0
    %467 = vmatprep.subr.mxu0 0.0
    %468 = vmatpush1.msra.mxu0 0.0
    %469 = vmatprep.subr.mxu0 0.0
    %470 = vmatpush1.msra.mxu0 0.0
    %471 = vmatprep.subr.mxu0 0.0
    %472 = vmatpush1.msra.mxu0 0.0
    %473 = vmatprep.subr.mxu0 0.0
    %474 = vmatpush1.msra.mxu0 0.0
    %475 = vmatprep.subr.mxu0 0.0
    %476 = vmatpush1.msra.mxu0 0.0
    %477 = vmatprep.subr.mxu0 0.0
    %478 = vmatpush1.msra.mxu0 %v281
    %479 = vmatprep.subr.mxu0 0.0
    %480 = vmatpush1.msra.mxu0 %v280
    %481 = vmatprep.subr.mxu0 0.0
    %482 = vmatpush2.msra.mxu0 0.0
    %483 = vmatprep.subr.mxu0 0.0
    %484 = vmatpush2.msra.mxu0 0.0
    %485 = vmatprep.subr.mxu0 0.0
    %486 = vmatpush2.msra.mxu0 0.0
    %487 = vmatprep.subr.mxu0 0.0
    %488 = vmatpush2.msra.mxu0 0.0
    %489 = vmatprep.subr.mxu0 0.0
    %490 = vmatpush2.msra.mxu0 0.0
    %491 = vmatprep.subr.mxu0 0.0
    %492 = vmatpush2.msra.mxu0 0.0
    %493 = vmatprep.subr.mxu0 0.0
    %494 = vmatpush2.msra.mxu0 0.0
    %495 = vmatprep.subr.mxu0 0.0
    %496 = vmatpush2.msra.mxu0 0.0
    %497 = vmatprep.subr.mxu0 0.0
    %498 = vmatpush2.msra.mxu0 0.0
    %499 = vmatprep.subr.mxu0 0.0
    %500 = vmatpush2.msra.mxu0 0.0
    %501 = vmatprep.subr.mxu0 0.0
    %502 = vmatpush2.msra.mxu0 0.0
    %503 = vmatprep.subr.mxu0 0.0
    %504 = vmatpush2.msra.mxu0 0.0
    %505 = vmatprep.subr.mxu0 0.0
    %506 = vmatpush2.msra.mxu0 0.0
    %507 = vmatprep.subr.mxu0 0.0
    %508 = vmatpush2.msra.mxu0 0.0
    %509 = vmatprep.subr.mxu0 0.0
    %510 = vmatpush2.msra.mxu0 0.0
    %511 = vmatprep.subr.mxu0 0.0
    %512 = vmatpush2.msra.mxu0 0.0
    %513 = vmatprep.mubr.bf16.mxu0 0
    %514 = vmatmul.mubr.bf16.gmra.mxu0 %v447
    %v515 = vpop.f32.mrf.mxu0
    %v516 = vadd.f32 0.0, %v515
    %v517 = vpop.f32.mrf.mxu0
    %v518 = vpop.f32.mrf.mxu0
    %v519 = vpop.f32.mrf.mxu0
    %520 = vdwg.mxu0
    %v521 = vrcp.pop %v444
    %v522 = vmul.f32 %v516, %v521
    %v523 = vadd.f32 %v522, %v322
    %v525 = vrot.slane %v328, 1
    %v527 = vsel %vm416, %v525, 0.0
    %v528 = vrot.slane %v527, 4
    %v529 = vadd.f32 %v527, %v528
    %v530 = vrot.slane %v529, 2
    %v531 = vadd.f32 %v529, %v530
    %v532 = vrot.slane %v531, 1
    %v533 = vadd.f32 %v531, %v532
    %v534 = vmul.f32 %v533, %v424
    %v535 = vrot.slane %v328, 6
    %v537 = vsel %vm429, %v535, 0.0
    %v538 = vrot.slane %v537, 4
    %v539 = vadd.f32 %v537, %v538
    %v540 = vrot.slane %v539, 2
    %v541 = vadd.f32 %v539, %v540
    %v542 = vrot.slane %v541, 1
    %v543 = vadd.f32 %v541, %v542
    %v544 = vmul.f32 %v543, %v437
    %v546 = vrot.slane %v523, 7
    %vm548 = vcmask 1040384
    %v549 = vsel %vm548, %v415, %v546
    %v550 = vsel %vm548, %v425, %v534
    %v551 = vsel %vm548, %v438, %v544
    %v552 = vpack.c.bf16 %v549, %v549
    %v554 = vlaneseq
    %v555 = vshrl.u32 %v554, 7
    %v556 = vsub.s32 0, %v555
    %v557 = vrot.slane %v140, %v556
    %v560 = vsel %vm222, %v552, 0
    %562 = vmatprep.subr.bf16.mxu0 0
    %563 = vmatpush1.bf16.msra.mxu0 0
    %564 = vmatprep.subr.bf16.mxu0 0
    %565 = vmatpush1.bf16.msra.mxu0 0
    %566 = vmatprep.subr.bf16.mxu0 0
    %567 = vmatpush1.bf16.msra.mxu0 0
    %568 = vmatprep.subr.bf16.mxu0 0
    %569 = vmatpush1.bf16.msra.mxu0 0
    %570 = vmatprep.subr.bf16.mxu0 0
    %571 = vmatpush1.bf16.msra.mxu0 0
    %572 = vmatprep.subr.bf16.mxu0 0
    %573 = vmatpush1.bf16.msra.mxu0 0
    %574 = vmatprep.subr.bf16.mxu0 0
    %575 = vmatpush1.bf16.msra.mxu0 %v139
    %576 = vmatprep.subr.bf16.mxu0 0
    %577 = vmatpush1.bf16.msra.mxu0 %v138
    %578 = vmatprep.subr.bf16.mxu0 0
    %579 = vmatpush2.bf16.msra.mxu0 0
    %580 = vmatprep.subr.bf16.mxu0 0
    %581 = vmatpush2.bf16.msra.mxu0 0
    %582 = vmatprep.subr.bf16.mxu0 0
    %583 = vmatpush2.bf16.msra.mxu0 0
    %584 = vmatprep.subr.bf16.mxu0 0
    %585 = vmatpush2.bf16.msra.mxu0 0
    %586 = vmatprep.subr.bf16.mxu0 0
    %587 = vmatpush2.bf16.msra.mxu0 0
    %588 = vmatprep.subr.bf16.mxu0 0
    %589 = vmatpush2.bf16.msra.mxu0 0
    %590 = vmatprep.subr.bf16.mxu0 0
    %591 = vmatpush2.bf16.msra.mxu0 0
    %592 = vmatprep.subr.bf16.mxu0 0
    %593 = vmatpush2.bf16.msra.mxu0 0
    %594 = vmatprep.mubr.bf16.mxu0 0
    %595 = vmatmul.mubr.bf16.gmra.mxu0 %v560
    %v596 = vpop.f32.mrf.mxu0
    %v597 = vadd.f32 %v557, %v596
    %v598 = vpop.f32.mrf.mxu0
    %v599 = vpop.f32.mrf.mxu0
    %v600 = vpop.f32.mrf.mxu0
    %601 = vdwg.mxu0
    %v602 = vtanh.pop %v597
    %v603 = vpack.c.bf16 %v550, %v550
    %v605 = vlaneseq
    %v606 = vshrl.u32 %v605, 7
    %v607 = vsub.s32 0, %v606
    %v608 = vrot.slane %v149, %v607
    %v611 = vsel %vm222, %v603, 0
    %613 = vmatprep.subr.bf16.mxu0 0
    %614 = vmatpush1.bf16.msra.mxu0 0
    %615 = vmatprep.subr.bf16.mxu0 0
    %616 = vmatpush1.bf16.msra.mxu0 0
    %617 = vmatprep.subr.bf16.mxu0 0
    %618 = vmatpush1.bf16.msra.mxu0 0
    %619 = vmatprep.subr.bf16.mxu0 0
    %620 = vmatpush1.bf16.msra.mxu0 0
    %621 = vmatprep.subr.bf16.mxu0 0
    %622 = vmatpush1.bf16.msra.mxu0 0
    %623 = vmatprep.subr.bf16.mxu0 0
    %624 = vmatpush1.bf16.msra.mxu0 0
    %625 = vmatprep.subr.bf16.mxu0 0
    %626 = vmatpush1.bf16.msra.mxu0 %v147
    %627 = vmatprep.subr.bf16.mxu0 0
    %628 = vmatpush1.bf16.msra.mxu0 %v146
    %629 = vmatprep.subr.bf16.mxu0 0
    %630 = vmatpush2.bf16.msra.mxu0 0
    %631 = vmatprep.subr.bf16.mxu0 0
    %632 = vmatpush2.bf16.msra.mxu0 0
    %633 = vmatprep.subr.bf16.mxu0 0
    %634 = vmatpush2.bf16.msra.mxu0 0
    %635 = vmatprep.subr.bf16.mxu0 0
    %636 = vmatpush2.bf16.msra.mxu0 0
    %637 = vmatprep.subr.bf16.mxu0 0
    %638 = vmatpush2.bf16.msra.mxu0 0
    %639 = vmatprep.subr.bf16.mxu0 0
    %640 = vmatpush2.bf16.msra.mxu0 0
    %641 = vmatprep.subr.bf16.mxu0 0
    %642 = vmatpush2.bf16.msra.mxu0 0
    %643 = vmatprep.subr.bf16.mxu0 0
    %644 = vmatpush2.bf16.msra.mxu0 0
    %645 = vmatprep.mubr.bf16.mxu0 0
    %646 = vmatmul.mubr.bf16.gmra.mxu0 %v611
    %v647 = vpop.f32.mrf.mxu0
    %v648 = vadd.f32 %v608, %v647
    %v649 = vpop.f32.mrf.mxu0
    %v650 = vpop.f32.mrf.mxu0
    %v651 = vpop.f32.mrf.mxu0
    %652 = vdwg.mxu0
    %v653 = vtanh.pop %v648
    %v654 = vpack.c.bf16 %v551, %v551
    %v656 = vlaneseq
    %v657 = vshrl.u32 %v656, 7
    %v658 = vsub.s32 0, %v657
    %v659 = vrot.slane %v158, %v658
    %v662 = vsel %vm222, %v654, 0
    %664 = vmatprep.subr.bf16.mxu0 0
    %665 = vmatpush1.bf16.msra.mxu0 0
    %666 = vmatprep.subr.bf16.mxu0 0
    %667 = vmatpush1.bf16.msra.mxu0 0
    %668 = vmatprep.subr.bf16.mxu0 0
    %669 = vmatpush1.bf16.msra.mxu0 0
    %670 = vmatprep.subr.bf16.mxu0 0
    %671 = vmatpush1.bf16.msra.mxu0 0
    %672 = vmatprep.subr.bf16.mxu0 0
    %673 = vmatpush1.bf16.msra.mxu0 0
    %674 = vmatprep.subr.bf16.mxu0 0
    %675 = vmatpush1.bf16.msra.mxu0 0
    %676 = vmatprep.subr.bf16.mxu0 0
    %677 = vmatpush1.bf16.msra.mxu0 %v156
    %678 = vmatprep.subr.bf16.mxu0 0
    %679 = vmatpush1.bf16.msra.mxu0 %v155
    %680 = vmatprep.subr.bf16.mxu0 0
    %681 = vmatpush2.bf16.msra.mxu0 0
    %682 = vmatprep.subr.bf16.mxu0 0
    %683 = vmatpush2.bf16.msra.mxu0 0
    %684 = vmatprep.subr.bf16.mxu0 0
    %685 = vmatpush2.bf16.msra.mxu0 0
    %686 = vmatprep.subr.bf16.mxu0 0
    %687 = vmatpush2.bf16.msra.mxu0 0
    %688 = vmatprep.subr.bf16.mxu0 0
    %689 = vmatpush2.bf16.msra.mxu0 0
    %690 = vmatprep.subr.bf16.mxu0 0
    %691 = vmatpush2.bf16.msra.mxu0 0
    %692 = vmatprep.subr.bf16.mxu0 0
    %693 = vmatpush2.bf16.msra.mxu0 0
    %694 = vmatprep.subr.bf16.mxu0 0
    %695 = vmatpush2.bf16.msra.mxu0 0
    %696 = vmatprep.mubr.bf16.mxu0 0
    %697 = vmatmul.mubr.bf16.gmra.mxu0 %v662
    %v698 = vpop.f32.mrf.mxu0
    %v699 = vadd.f32 %v659, %v698
    %v700 = vpop.f32.mrf.mxu0
    %v701 = vpop.f32.mrf.mxu0
    %v702 = vpop.f32.mrf.mxu0
    %703 = vdwg.mxu0
    %v704 = vtanh.pop %v699
    %v705 = vpack.c.bf16 %v328, %v327
    %v706 = vpack.c.bf16 %v329, %v329
    %v708 = vlaneseq
    %v709 = vshrl.u32 %v708, 7
    %v710 = vsub.s32 0, %v709
    %v711 = vrot.slane %v167, %v710
    %v714 = vsel %vm222, %v705, 0
    %v717 = vsel %vm222, %v706, 0
    %719 = vmatprep.subr.bf16.mxu0 0
    %720 = vmatpush1.bf16.msra.mxu0 0
    %721 = vmatprep.subr.bf16.mxu0 0
    %722 = vmatpush1.bf16.msra.mxu0 0
    %723 = vmatprep.subr.bf16.mxu0 0
    %724 = vmatpush1.bf16.msra.mxu0 0
    %725 = vmatprep.subr.bf16.mxu0 0
    %726 = vmatpush1.bf16.msra.mxu0 0
    %727 = vmatprep.subr.bf16.mxu0 0
    %728 = vmatpush1.bf16.msra.mxu0 0
    %729 = vmatprep.subr.bf16.mxu0 0
    %730 = vmatpush1.bf16.msra.mxu0 0
    %731 = vmatprep.subr.bf16.mxu0 0
    %732 = vmatpush1.bf16.msra.mxu0 %v165
    %733 = vmatprep.subr.bf16.mxu0 0
    %734 = vmatpush1.bf16.msra.mxu0 %v164
    %735 = vmatprep.subr.bf16.mxu0 0
    %736 = vmatpush2.bf16.msra.mxu0 0
    %737 = vmatprep.subr.bf16.mxu0 0
    %738 = vmatpush2.bf16.msra.mxu0 0
    %739 = vmatprep.subr.bf16.mxu0 0
    %740 = vmatpush2.bf16.msra.mxu0 0
    %741 = vmatprep.subr.bf16.mxu0 0
    %742 = vmatpush2.bf16.msra.mxu0 0
    %743 = vmatprep.subr.bf16.mxu0 0
    %744 = vmatpush2.bf16.msra.mxu0 0
    %745 = vmatprep.subr.bf16.mxu0 0
    %746 = vmatpush2.bf16.msra.mxu0 0
    %747 = vmatprep.subr.bf16.mxu0 0
    %748 = vmatpush2.bf16.msra.mxu0 0
    %749 = vmatprep.subr.bf16.mxu0 0
    %750 = vmatpush2.bf16.msra.mxu0 0
    %751 = vmatprep.mubr.bf16.mxu0 0
    %752 = vmatmul.mubr.bf16.gmra.mxu0 %v714
    %v753 = vpop.f32.mrf.mxu0
    %v754 = vadd.f32 %v711, %v753
    %v755 = vpop.f32.mrf.mxu0
    %v756 = vpop.f32.mrf.mxu0
    %v757 = vadd.f32 %v711, %v756
    %v758 = vpop.f32.mrf.mxu0
    %759 = vmatprep.mubr.bf16.mxu0 0
    %760 = vmatmul.mubr.bf16.gmra.mxu0 %v717
    %v761 = vpop.f32.mrf.mxu0
    %v762 = vadd.f32 %v711, %v761
    %v763 = vpop.f32.mrf.mxu0
    %v764 = vpop.f32.mrf.mxu0
    %v765 = vpop.f32.mrf.mxu0
    %766 = vdwg.mxu0
    %v767 = vtanh.pop %v754
    %v768 = vtanh.pop %v757
    %v769 = vtanh.pop %v762
    %v770 = vmul.f32 %v653, %v653
    %v771 = vsel %vm429, %v770, 0.0
    %772 = vadd.xlane.f32.xlu0 %v771
    %v773 = vpop.xlane.xlu0 %772
    %v774 = vmax.f32 %v773, 1e-16
    %v775 = vrsqrt.pop %v774
    %v776 = vmul.f32 %v653, %v775
    %v777 = vmul.f32 %v704, %v704
    %v778 = vsel %vm429, %v777, 0.0
    %779 = vadd.xlane.f32.xlu0 %v778
    %v780 = vpop.xlane.xlu0 %779
    %v781 = vmax.f32 %v780, 1e-16
    %v782 = vrsqrt.pop %v781
    %v783 = vmul.f32 %v704, %v782
    %v784 = vmul.f32 %v767, %v767
    %v785 = vmul.f32 %v768, %v768
    %v786 = vmul.f32 %v769, %v769
    %v787 = vsel %vm222, %v784, 0.0
    %788 = vadd.xlane.f32.xlu0 %v787
    %v789 = vpop.xlane.xlu0 %788
    %v790 = vsel %vm222, %v785, 0.0
    %791 = vadd.xlane.f32.xlu0 %v790
    %v792 = vpop.xlane.xlu0 %791
    %v793 = vsel %vm429, %v786, 0.0
    %794 = vadd.xlane.f32.xlu0 %v793
    %v795 = vpop.xlane.xlu0 %794
    %v796 = vmax.f32 %v789, 1e-16
    %v797 = vmax.f32 %v792, 1e-16
    %v798 = vmax.f32 %v795, 1e-16
    %v799 = vrsqrt.pop %v796
    %v800 = vrsqrt.pop %v797
    %v801 = vrsqrt.pop %v798
    %v802 = vmul.f32 %v767, %v799
    %v803 = vmul.f32 %v768, %v800
    %v804 = vmul.f32 %v769, %v801
    %v806 = vrot.slane %v783, 7
    %v808 = vsel %vm548, %v776, %v806
    %v810 = vsel %vm222, %v808, 0
    %v813 = vsel %vm222, %v802, 0
    %v816 = vsel %vm222, %v803, 0
    %818 = vmatprep.subr.mxu0 0.0
    %819 = vmatpush1.xpose.msra.mxu0 0.0
    %820 = vmatprep.subr.mxu0 0.0
    %821 = vmatpush1.xpose.msra.mxu0 0.0
    %822 = vmatprep.subr.mxu0 0.0
    %823 = vmatpush1.xpose.msra.mxu0 0.0
    %824 = vmatprep.subr.mxu0 0.0
    %825 = vmatpush1.xpose.msra.mxu0 0.0
    %826 = vmatprep.subr.mxu0 0.0
    %827 = vmatpush1.xpose.msra.mxu0 0.0
    %828 = vmatprep.subr.mxu0 0.0
    %829 = vmatpush1.xpose.msra.mxu0 0.0
    %830 = vmatprep.subr.mxu0 0.0
    %831 = vmatpush1.xpose.msra.mxu0 0.0
    %832 = vmatprep.subr.mxu0 0.0
    %833 = vmatpush1.xpose.msra.mxu0 0.0
    %834 = vmatprep.subr.mxu0 0.0
    %835 = vmatpush1.xpose.msra.mxu0 0.0
    %836 = vmatprep.subr.mxu0 0.0
    %837 = vmatpush1.xpose.msra.mxu0 0.0
    %838 = vmatprep.subr.mxu0 0.0
    %839 = vmatpush1.xpose.msra.mxu0 0.0
    %840 = vmatprep.subr.mxu0 0.0
    %841 = vmatpush1.xpose.msra.mxu0 0.0
    %842 = vmatprep.subr.mxu0 0.0
    %843 = vmatpush1.xpose.msra.mxu0 0.0
    %844 = vmatprep.subr.mxu0 0.0
    %845 = vmatpush1.xpose.msra.mxu0 0.0
    %846 = vmatprep.subr.mxu0 0.0
    %847 = vmatpush1.xpose.msra.mxu0 %v816
    %848 = vmatprep.subr.mxu0 0.0
    %849 = vmatpush1.xpose.msra.mxu0 %v813
    %850 = vmatprep.subr.mxu0 0.0
    %851 = vmatpush2.xpose.msra.mxu0 0.0
    %852 = vmatprep.subr.mxu0 0.0
    %853 = vmatpush2.xpose.msra.mxu0 0.0
    %854 = vmatprep.subr.mxu0 0.0
    %855 = vmatpush2.xpose.msra.mxu0 0.0
    %856 = vmatprep.subr.mxu0 0.0
    %857 = vmatpush2.xpose.msra.mxu0 0.0
    %858 = vmatprep.subr.mxu0 0.0
    %859 = vmatpush2.xpose.msra.mxu0 0.0
    %860 = vmatprep.subr.mxu0 0.0
    %861 = vmatpush2.xpose.msra.mxu0 0.0
    %862 = vmatprep.subr.mxu0 0.0
    %863 = vmatpush2.xpose.msra.mxu0 0.0
    %864 = vmatprep.subr.mxu0 0.0
    %865 = vmatpush2.xpose.msra.mxu0 0.0
    %866 = vmatprep.subr.mxu0 0.0
    %867 = vmatpush2.xpose.msra.mxu0 0.0
    %868 = vmatprep.subr.mxu0 0.0
    %869 = vmatpush2.xpose.msra.mxu0 0.0
    %870 = vmatprep.subr.mxu0 0.0
    %871 = vmatpush2.xpose.msra.mxu0 0.0
    %872 = vmatprep.subr.mxu0 0.0
    %873 = vmatpush2.xpose.msra.mxu0 0.0
    %874 = vmatprep.subr.mxu0 0.0
    %875 = vmatpush2.xpose.msra.mxu0 0.0
    %876 = vmatprep.subr.mxu0 0.0
    %877 = vmatpush2.xpose.msra.mxu0 0.0
    %878 = vmatprep.subr.mxu0 0.0
    %879 = vmatpush2.xpose.msra.mxu0 0.0
    %880 = vmatprep.subr.mxu0 0.0
    %881 = vmatpush2.xpose.msra.mxu0 0.0
    %882 = vmatprep.mubr.f32.mxu0 0.0
    %883 = vmatmul.mubr.f32.gmra.mxu0 %v810
    %v884 = vpop.f32.mrf.mxu0
    %v885 = vadd.f32 0.0, %v884
    %v886 = vpop.f32.mrf.mxu0
    %887 = vdwg.mxu0
    %v889 = vrot.slane %v776, 1
    %v891 = vsel %vm548, %v889, %v783
    %vm893 = vcmask 1046528
    %v894 = vrot.slane %v803, 1
    %v895 = vrot.slane %v804, 1
    %v896 = vsel %vm893, %v894, %v895
    %v898 = vsel %vm222, %v891, 0
    %v900 = vsel %vm222, %v896, 0
    %v902 = vsel %vm222, %v895, 0
    %904 = vmatprep.subr.mxu0 0.0
    %905 = vmatpush1.xpose.msra.mxu0 0.0
    %906 = vmatprep.subr.mxu0 0.0
    %907 = vmatpush1.xpose.msra.mxu0 0.0
    %908 = vmatprep.subr.mxu0 0.0
    %909 = vmatpush1.xpose.msra.mxu0 0.0
    %910 = vmatprep.subr.mxu0 0.0
    %911 = vmatpush1.xpose.msra.mxu0 0.0
    %912 = vmatprep.subr.mxu0 0.0
    %913 = vmatpush1.xpose.msra.mxu0 0.0
    %914 = vmatprep.subr.mxu0 0.0
    %915 = vmatpush1.xpose.msra.mxu0 0.0
    %916 = vmatprep.subr.mxu0 0.0
    %917 = vmatpush1.xpose.msra.mxu0 0.0
    %918 = vmatprep.subr.mxu0 0.0
    %919 = vmatpush1.xpose.msra.mxu0 0.0
    %920 = vmatprep.subr.mxu0 0.0
    %921 = vmatpush1.xpose.msra.mxu0 0.0
    %922 = vmatprep.subr.mxu0 0.0
    %923 = vmatpush1.xpose.msra.mxu0 0.0
    %924 = vmatprep.subr.mxu0 0.0
    %925 = vmatpush1.xpose.msra.mxu0 0.0
    %926 = vmatprep.subr.mxu0 0.0
    %927 = vmatpush1.xpose.msra.mxu0 0.0
    %928 = vmatprep.subr.mxu0 0.0
    %929 = vmatpush1.xpose.msra.mxu0 0.0
    %930 = vmatprep.subr.mxu0 0.0
    %931 = vmatpush1.xpose.msra.mxu0 0.0
    %932 = vmatprep.subr.mxu0 0.0
    %933 = vmatpush1.xpose.msra.mxu0 %v902
    %934 = vmatprep.subr.mxu0 0.0
    %935 = vmatpush1.xpose.msra.mxu0 %v900
    %936 = vmatprep.subr.mxu0 0.0
    %937 = vmatpush2.xpose.msra.mxu0 0.0
    %938 = vmatprep.subr.mxu0 0.0
    %939 = vmatpush2.xpose.msra.mxu0 0.0
    %940 = vmatprep.subr.mxu0 0.0
    %941 = vmatpush2.xpose.msra.mxu0 0.0
    %942 = vmatprep.subr.mxu0 0.0
    %943 = vmatpush2.xpose.msra.mxu0 0.0
    %944 = vmatprep.subr.mxu0 0.0
    %945 = vmatpush2.xpose.msra.mxu0 0.0
    %946 = vmatprep.subr.mxu0 0.0
    %947 = vmatpush2.xpose.msra.mxu0 0.0
    %948 = vmatprep.subr.mxu0 0.0
    %949 = vmatpush2.xpose.msra.mxu0 0.0
    %950 = vmatprep.subr.mxu0 0.0
    %951 = vmatpush2.xpose.msra.mxu0 0.0
    %952 = vmatprep.subr.mxu0 0.0
    %953 = vmatpush2.xpose.msra.mxu0 0.0
    %954 = vmatprep.subr.mxu0 0.0
    %955 = vmatpush2.xpose.msra.mxu0 0.0
    %956 = vmatprep.subr.mxu0 0.0
    %957 = vmatpush2.xpose.msra.mxu0 0.0
    %958 = vmatprep.subr.mxu0 0.0
    %959 = vmatpush2.xpose.msra.mxu0 0.0
    %960 = vmatprep.subr.mxu0 0.0
    %961 = vmatpush2.xpose.msra.mxu0 0.0
    %962 = vmatprep.subr.mxu0 0.0
    %963 = vmatpush2.xpose.msra.mxu0 0.0
    %964 = vmatprep.subr.mxu0 0.0
    %965 = vmatpush2.xpose.msra.mxu0 0.0
    %966 = vmatprep.subr.mxu0 0.0
    %967 = vmatpush2.xpose.msra.mxu0 0.0
    %968 = vmatprep.mubr.f32.mxu0 0.0
    %969 = vmatmul.mubr.f32.gmra.mxu0 %v898
    %v970 = vpop.f32.mrf.mxu0
    %v971 = vadd.f32 0.0, %v970
    %v972 = vpop.f32.mrf.mxu0
    %973 = vdwg.mxu0
    %v975 = vrot.slane %v971, 7
    %v977 = vsel %vm548, %v885, %v975
    %v979 = vrot.slane %v885, 1
    %v981 = vsel %vm548, %v979, %v971
    %v982 = vpack.c.bf16 %v602, %v602
    %v984 = vlaneseq
    %v985 = vshrl.u32 %v984, 7
    %v986 = vsub.s32 0, %v985
    %v987 = vrot.slane %v174, %v986
    %v990 = vsel %vm222, %v982, 0
    %992 = vmatprep.subr.bf16.mxu0 0
    %993 = vmatpush1.bf16.msra.mxu0 0
    %994 = vmatprep.subr.bf16.mxu0 0
    %995 = vmatpush1.bf16.msra.mxu0 0
    %996 = vmatprep.subr.bf16.mxu0 0
    %997 = vmatpush1.bf16.msra.mxu0 0
    %998 = vmatprep.subr.bf16.mxu0 0
    %999 = vmatpush1.bf16.msra.mxu0 0
    %1000 = vmatprep.subr.bf16.mxu0 0
    %1001 = vmatpush1.bf16.msra.mxu0 0
    %1002 = vmatprep.subr.bf16.mxu0 0
    %1003 = vmatpush1.bf16.msra.mxu0 0
    %1004 = vmatprep.subr.bf16.mxu0 0
    %1005 = vmatpush1.bf16.msra.mxu0 %v173
    %1006 = vmatprep.subr.bf16.mxu0 0
    %1007 = vmatpush1.bf16.msra.mxu0 %v172
    %1008 = vmatprep.subr.bf16.mxu0 0
    %1009 = vmatpush2.bf16.msra.mxu0 0
    %1010 = vmatprep.subr.bf16.mxu0 0
    %1011 = vmatpush2.bf16.msra.mxu0 0
    %1012 = vmatprep.subr.bf16.mxu0 0
    %1013 = vmatpush2.bf16.msra.mxu0 0
    %1014 = vmatprep.subr.bf16.mxu0 0
    %1015 = vmatpush2.bf16.msra.mxu0 0
    %1016 = vmatprep.subr.bf16.mxu0 0
    %1017 = vmatpush2.bf16.msra.mxu0 0
    %1018 = vmatprep.subr.bf16.mxu0 0
    %1019 = vmatpush2.bf16.msra.mxu0 0
    %1020 = vmatprep.subr.bf16.mxu0 0
    %1021 = vmatpush2.bf16.msra.mxu0 0
    %1022 = vmatprep.subr.bf16.mxu0 0
    %1023 = vmatpush2.bf16.msra.mxu0 0
    %1024 = vmatprep.mubr.bf16.mxu0 0
    %1025 = vmatmul.mubr.bf16.gmra.mxu0 %v990
    %v1026 = vpop.f32.mrf.mxu0
    %v1027 = vadd.f32 %v987, %v1026
    %v1028 = vpop.f32.mrf.mxu0
    %v1029 = vpop.f32.mrf.mxu0
    %v1030 = vpop.f32.mrf.mxu0
    %1031 = vdwg.mxu0
    %v1032 = vtanh.pop %v1027
    %v1033 = vpack.c.bf16 %v1032, %v1032
    %v1035 = vlaneseq
    %v1036 = vshrl.u32 %v1035, 7
    %v1037 = vsub.s32 0, %v1036
    %v1038 = vrot.slane %v181, %v1037
    %v1041 = vsel %vm222, %v1033, 0
    %1043 = vmatprep.subr.bf16.mxu0 0
    %1044 = vmatpush1.bf16.msra.mxu0 0
    %1045 = vmatprep.subr.bf16.mxu0 0
    %1046 = vmatpush1.bf16.msra.mxu0 0
    %1047 = vmatprep.subr.bf16.mxu0 0
    %1048 = vmatpush1.bf16.msra.mxu0 0
    %1049 = vmatprep.subr.bf16.mxu0 0
    %1050 = vmatpush1.bf16.msra.mxu0 0
    %1051 = vmatprep.subr.bf16.mxu0 0
    %1052 = vmatpush1.bf16.msra.mxu0 0
    %1053 = vmatprep.subr.bf16.mxu0 0
    %1054 = vmatpush1.bf16.msra.mxu0 0
    %1055 = vmatprep.subr.bf16.mxu0 0
    %1056 = vmatpush1.bf16.msra.mxu0 %v180
    %1057 = vmatprep.subr.bf16.mxu0 0
    %1058 = vmatpush1.bf16.msra.mxu0 %v179
    %1059 = vmatprep.subr.bf16.mxu0 0
    %1060 = vmatpush2.bf16.msra.mxu0 0
    %1061 = vmatprep.subr.bf16.mxu0 0
    %1062 = vmatpush2.bf16.msra.mxu0 0
    %1063 = vmatprep.subr.bf16.mxu0 0
    %1064 = vmatpush2.bf16.msra.mxu0 0
    %1065 = vmatprep.subr.bf16.mxu0 0
    %1066 = vmatpush2.bf16.msra.mxu0 0
    %1067 = vmatprep.subr.bf16.mxu0 0
    %1068 = vmatpush2.bf16.msra.mxu0 0
    %1069 = vmatprep.subr.bf16.mxu0 0
    %1070 = vmatpush2.bf16.msra.mxu0 0
    %1071 = vmatprep.subr.bf16.mxu0 0
    %1072 = vmatpush2.bf16.msra.mxu0 0
    %1073 = vmatprep.subr.bf16.mxu0 0
    %1074 = vmatpush2.bf16.msra.mxu0 0
    %1075 = vmatprep.mubr.bf16.mxu0 0
    %1076 = vmatmul.mubr.bf16.gmra.mxu0 %v1041
    %v1077 = vpop.f32.mrf.mxu0
    %v1078 = vadd.f32 %v1038, %v1077
    %v1079 = vpop.f32.mrf.mxu0
    %v1080 = vpop.f32.mrf.mxu0
    %v1081 = vpop.f32.mrf.mxu0
    %1082 = vdwg.mxu0
    %1084 = vrot.lane.b32.xlu0 %v977, 4
    %v1085 = vpop.permute.xlu0 %1084
    %1088 = vrot.lane.b32.xlu0 %v981, 13
    %v1089 = vpop.permute.xlu0 %1088
    %vm1091 = vcmask 31744
    %v1092 = vsel %vm1091, %v1078, %v1085
    %vm1093 = vcmask 105472
    %v1094 = vsel %vm1093, %v1092, %v1089
    %vm1095 = vcmask 179200
    %v1096 = vsel %vm1095, %v1094, 0.0
    %1097 = vst [vmem:[#allocation11] sm:$0x3] %v1096
    // Predicated region
    $region82: #{tpu_custom_call.1} parent=1 // pred_check
      _
    $region83: #{tpu_custom_call.1} parent=1 // pred_check_branch
      %1099 = sbr.rel (0) target = $region85
    $region84: #{tpu_custom_call.1} parent=1 // pred_region
      %s1101 = ssub.s32 32, 32
      %1102 = vsyncadd [#allocation4], %s1101
      %s1104 = sshll.u32 [#allocation11], 4
      %s1105 = int_to_ptr.vmem [resolvable:$true] %s1104
      %1107 = dma.vmem_to_hbm [thread:$0]  %s1105, 32, %s15, [#allocation4]
    $region85: #{tpu_custom_call.1} parent=1 // pred_fallthru
      _
    // Predicated region
    $region86: #{tpu_custom_call.1} parent=1 // pred_check
      _
    $region87: #{tpu_custom_call.1} parent=1 // pred_check_branch
      %1109 = sbr.rel (0) target = $region89
    $region88: #{tpu_custom_call.1} parent=1 // pred_region
      %1110 = dma.done [#allocation4], 32
    $region89: #{tpu_custom_call.1} parent=1 // pred_fallthru
      _
    %1111 = vsyncpa [#allocation3], 1
    %1112 = vsyncpa [#allocation6], 1
    %1113 = vsyncpa [#allocation9], 1
    %1114 = vsyncpa [#allocation4], 1

</llo_original>
